<compile_context>
chip_gen: v7x
topology: tpu7x:2x2x1
jax: 0.10.0
libtpu: 0.0.40
codegen_flags: <defaults>
</compile_context>

<pallas_src>
import functools

import jax
import jax.numpy as jnp
from jax.experimental import pallas as pl
from jax.experimental.pallas import tpu as pltpu


# ----------------------------------------------------------------------------
# Pallas kernel: fused (x @ w) + bias [+ residual] [+ ReLU], f32 accumulator
# ----------------------------------------------------------------------------
def _mm_bias_act_kernel(*refs, relu, has_res):
    if has_res:
        x_ref, w_ref, b_ref, r_ref, o_ref, acc_ref = refs
    else:
        x_ref, w_ref, b_ref, o_ref, acc_ref = refs
        r_ref = None

    k = pl.program_id(2)

    @pl.when(k == 0)
    def _():
        acc_ref[...] = jnp.zeros_like(acc_ref)

    acc_ref[...] += jnp.dot(x_ref[...], w_ref[...],
                            preferred_element_type=jnp.float32)

    @pl.when(k == pl.num_programs(2) - 1)
    def _():
        y = acc_ref[...] + b_ref[...]
        if r_ref is not None:
            y = y + r_ref[...].astype(jnp.float32)
        if relu:
            y = jnp.maximum(y, 0.0)
        o_ref[...] = y.astype(o_ref.dtype)


def _round_up(x, m):
    return (x + m - 1) // m * m


def matmul_bias_act(x, w_pad, b_pad, *, n_out, relu, residual=None,
                    out_dtype=jnp.bfloat16):
    """Fused (x @ w_pad) + bias [+ residual] [ReLU].

    x: (M, K) any float (cast to bf16 here).
    w_pad: (Kp, Np) bf16, BN scale already folded in, Kp/Np multiples of 128.
    b_pad: (1, Np) f32.  residual: (M, n_out) or None.
    Returns (M, n_out) in out_dtype with an f32 accumulator inside the kernel.
    """
    M, K = x.shape
    Kp, Np = w_pad.shape

    TM = min(128, _round_up(M, 8))          # no 128-padding of tiny M
    Mp = _round_up(M, TM)
    TN = 256 if (Np >= 512 and Np % 256 == 0) else 128
    TK = 512 if Kp % 512 == 0 else (256 if Kp % 256 == 0 else 128)

    xp = jnp.pad(x.astype(jnp.bfloat16), ((0, Mp - M), (0, Kp - K)))

    inputs = [xp, w_pad, b_pad]
    in_specs = [
        pl.BlockSpec((TM, TK), lambda i, j, k: (i, k)),
        pl.BlockSpec((TK, TN), lambda i, j, k: (k, j)),
        pl.BlockSpec((1, TN), lambda i, j, k: (0, j)),
    ]
    has_res = residual is not None
    if has_res:
        rp = jnp.pad(residual.astype(jnp.bfloat16),
                     ((0, Mp - M), (0, Np - n_out)))
        inputs.append(rp)
        in_specs.append(pl.BlockSpec((TM, TN), lambda i, j, k: (i, j)))

    kernel = functools.partial(_mm_bias_act_kernel, relu=relu, has_res=has_res)
    out = pl.pallas_call(
        kernel,
        out_shape=jax.ShapeDtypeStruct((Mp, Np), out_dtype),
        grid_spec=pltpu.PrefetchScalarGridSpec(
            num_scalar_prefetch=0,
            grid=(Mp // TM, Np // TN, Kp // TK),
            in_specs=in_specs,
            out_specs=pl.BlockSpec((TM, TN), lambda i, j, k: (i, j)),
            scratch_shapes=[pltpu.VMEM((TM, TN), jnp.float32)],
        ),
        compiler_params=pltpu.CompilerParams(
            dimension_semantics=("parallel", "parallel", "arbitrary")),
    )(*inputs)
    return out[:M, :n_out]


# ----------------------------------------------------------------------------
# Conv helpers (plain-JAX glue around the Pallas matmul)
# ----------------------------------------------------------------------------
def _interleave2x2(p00, p01, p10, p11):
    """out[:, 2i+py, 2j+px, :] = p{py}{px}[:, i, j, :]."""
    N, H, W, C = p00.shape
    ph = jnp.stack([p00, p01, p10, p11], axis=3).reshape(N, H, W, 2, 2, C)
    ph = ph.transpose(0, 1, 3, 2, 4, 5)
    return ph.reshape(N, 2 * H, 2 * W, C)


def _conv3x3_s1(x, w_pad, b_pad, n_out):
    """ConvTranspose2d k3 s1 p1 == conv with flipped kernel, pad 1 (im2col, bf16)."""
    N, H, W, C = x.shape
    xp = jnp.pad(x, ((0, 0), (1, 1), (1, 1), (0, 0)))
    cols = [xp[:, dy:dy + H, dx:dx + W, :] for dy in range(3) for dx in range(3)]
    X = jnp.concatenate(cols, axis=-1).reshape(N * H * W, 9 * C)
    y = matmul_bias_act(X, w_pad, b_pad, n_out=n_out, relu=True)
    return y.reshape(N, H, W, n_out)


def _convT3x3_s2(x, w_phases, b_pad, n_out):
    """ConvTranspose2d k3 s2 p1 op1 via sub-pixel phase decomposition (no zero im2col).

    out[2i,2j]     = x[i,j]   @ W[:,:,1,1]
    out[2i,2j+1]   = x[i,j]   @ W[:,:,1,2] + x[i,j+1]   @ W[:,:,1,0]
    out[2i+1,2j]   = x[i,j]   @ W[:,:,2,1] + x[i+1,j]   @ W[:,:,0,1]
    out[2i+1,2j+1] = x[i,j]   @ W[:,:,2,2] + x[i,j+1]   @ W[:,:,2,0]
                   + x[i+1,j] @ W[:,:,0,2] + x[i+1,j+1] @ W[:,:,0,0]
    (x zero-padded by 1 on bottom/right.)
    """
    N, H, W, C = x.shape
    xp = jnp.pad(x, ((0, 0), (0, 1), (0, 1), (0, 0)))
    x00 = x
    x01 = xp[:, :H, 1:W + 1, :]
    x10 = xp[:, 1:H + 1, :W, :]
    x11 = xp[:, 1:H + 1, 1:W + 1, :]
    M = N * H * W
    phase_in = {
        "A": x00.reshape(M, C),
        "B": jnp.concatenate([x00, x01], axis=-1).reshape(M, 2 * C),
        "C": jnp.concatenate([x00, x10], axis=-1).reshape(M, 2 * C),
        "D": jnp.concatenate([x00, x01, x10, x11], axis=-1).reshape(M, 4 * C),
    }
    outs = {}
    for ph in "ABCD":
        y = matmul_bias_act(phase_in[ph], w_phases[ph], b_pad, n_out=n_out,
                            relu=True)
        outs[ph] = y.reshape(N, H, W, n_out)
    return _interleave2x2(outs["A"], outs["B"], outs["C"], outs["D"])


# ----------------------------------------------------------------------------
# Parameters (PyTorch layout) + one-time baking (fold BN, flip, pad, bf16)
# ----------------------------------------------------------------------------
class KeyGen:
    def __init__(self, key):
        self.key = key

    def __call__(self):
        self.key, sub = jax.random.split(self.key)
        return sub


def init_convT(kg, cin, cout, k):
    fan_in = float(cin * k * k)
    return jax.random.normal(kg(), (cin, cout, k, k), jnp.float32) / fan_in ** 0.5


def init_bn(kg, c):
    return dict(
        gamma=1.0 + 0.1 * jax.random.normal(kg(), (c,), jnp.float32),
        beta=0.05 * jax.random.normal(kg(), (c,), jnp.float32),
        mean=0.1 * jax.random.normal(kg(), (c,), jnp.float32),
        var=1.0 + 0.1 * jax.random.uniform(kg(), (c,), jnp.float32),
    )


def fold_bn(bn, eps=1e-5):
    scale = bn["gamma"] * jax.lax.rsqrt(bn["var"] + eps)
    bias = bn["beta"] - bn["mean"] * scale
    return scale, bias


def init_block_params(key, in_channels, intermediate_channels, stride):
    mid = intermediate_channels // 4
    kg = KeyGen(key)
    p = dict(
        conv1=init_convT(kg, in_channels, mid, 1), bn1=init_bn(kg, mid),
        conv2=init_convT(kg, mid, mid, 3), bn2=init_bn(kg, mid),
        conv3=init_convT(kg, mid, mid, 1), bn3=init_bn(kg, mid),
    )
    has_down = (stride != 1) or (in_channels != mid)
    if has_down:
        p["down_conv"] = init_convT(kg, in_channels, mid, 1)
        p["down_bn"] = init_bn(kg, mid)
    return p, has_down, mid


def _pack_w(w2d, scale, bias):
    """Fold BN scale into weight columns, pad K/N to 128, cast bf16; bias stays f32."""
    K, N = w2d.shape
    Kp, Np = _round_up(K, 128), _round_up(N, 128)
    w_pad = jnp.pad(w2d * scale[None, :], ((0, Kp - K), (0, Np - N))).astype(jnp.bfloat16)
    b_pad = jnp.pad(bias, (0, Np - N)).reshape(1, Np).astype(jnp.float32)
    return w_pad, b_pad


def prepare_block(params, stride, has_down):
    """One-time weight baking (done outside the hot forward path)."""
    if stride not in (1, 2):
        raise NotImplementedError("decoder_block stride must be 1 or 2")  # TODO(synk)
    prep = {}
    s1, b1 = fold_bn(params["bn1"])
    prep["w1"], prep["b1"] = _pack_w(params["conv1"][:, :, 0, 0], s1, b1)

    s2, b2 = fold_bn(params["bn2"])
    W2 = params["conv2"]  # (mid, mid, 3, 3), PyTorch ConvTranspose2d layout
    if stride == 1:
        w2 = jnp.concatenate([W2[:, :, 2 - dy, 2 - dx]
                              for dy in range(3) for dx in range(3)], axis=0)
        prep["w2"], prep["b2"] = _pack_w(w2, s2, b2)
    else:
        taps = {
            "A": [(1, 1)],
            "B": [(1, 2), (1, 0)],
            "C": [(2, 1), (0, 1)],
            "D": [(2, 2), (2, 0), (0, 2), (0, 0)],
        }
        prep["w2_phases"] = {}
        for ph, tlist in taps.items():
            w = jnp.concatenate([W2[:, :, a, b] for (a, b) in tlist], axis=0)
            prep["w2_phases"][ph], prep["b2"] = _pack_w(w, s2, b2)

    s3, b3 = fold_bn(params["bn3"])
    prep["w3"], prep["b3"] = _pack_w(params["conv3"][:, :, 0, 0], s3, b3)

    if has_down:
        sd, bd = fold_bn(params["down_bn"])
        prep["wd"], prep["bd_pad"] = _pack_w(params["down_conv"][:, :, 0, 0], sd, bd)
        prep["bd"] = bd  # unpadded bias: fills odd output positions of 1x1 s2 convT
    return prep


# ----------------------------------------------------------------------------
# decoder_block forward (mirrors the PyTorch module)
# ----------------------------------------------------------------------------
def decoder_block_forward(prep, x_nchw, *, mid, stride, has_down):
    x = jnp.transpose(x_nchw, (0, 2, 3, 1)).astype(jnp.bfloat16)  # NCHW -> NHWC
    N, H, W, Cin = x.shape
    x_flat = x.reshape(N * H * W, Cin)

    # conv1 (1x1 convT) + bn1 + relu
    out = matmul_bias_act(x_flat, prep["w1"], prep["b1"], n_out=mid, relu=True)
    out = out.reshape(N, H, W, mid)

    # conv2 (3x3 convT, stride 1 or 2) + bn2 + relu
    if stride == 1:
        out = _conv3x3_s1(out, prep["w2"], prep["b2"], mid)
    else:
        out = _convT3x3_s2(out, prep["w2_phases"], prep["b2"], mid)

    # identity path
    if has_down:
        a = matmul_bias_act(x_flat, prep["wd"], prep["bd_pad"], n_out=mid,
                            relu=False).reshape(N, H, W, mid)
        if stride == 1:
            ident = a
        else:
            # 1x1 stride-2 op-1 convT: even/even = conv+BN, everything else = BN bias
            bfill = jnp.broadcast_to(prep["bd"].astype(jnp.bfloat16),
                                     (N, H, W, mid))
            ident = _interleave2x2(a, bfill, bfill, bfill)
    else:
        ident = x  # requires stride == 1 and Cin == mid (as in the PyTorch module)

    # conv3 (1x1 convT) + bn3 + residual add + relu, fused in the kernel epilogue
    Ho, Wo = out.shape[1], out.shape[2]
    y = matmul_bias_act(out.reshape(N * Ho * Wo, mid), prep["w3"], prep["b3"],
                        n_out=mid, relu=True,
                        residual=ident.reshape(N * Ho * Wo, mid),
                        out_dtype=jnp.float32)
    return jnp.transpose(y.reshape(N, Ho, Wo, mid), (0, 3, 1, 2))  # NHWC -> NCHW


# ----------------------------------------------------------------------------
# Pure-JAX f32 reference (for validation)
# ----------------------------------------------------------------------------
def _convT_ref(x_nhwc, W, stride, padding, out_pad):
    kh = W.shape[2]
    w_hwio = jnp.transpose(W[:, :, ::-1, ::-1], (2, 3, 0, 1))
    lo = kh - 1 - padding
    hi = kh - 1 - padding + out_pad
    return jax.lax.conv_general_dilated(
        x_nhwc, w_hwio, window_strides=(1, 1), padding=((lo, hi), (lo, hi)),
        lhs_dilation=(stride, stride),
        dimension_numbers=("NHWC", "HWIO", "NHWC"))


def decoder_block_ref(params, x_nchw, stride, has_down):
    x = jnp.transpose(x_nchw, (0, 2, 3, 1)).astype(jnp.float32)
    s1, b1 = fold_bn(params["bn1"])
    s2, b2 = fold_bn(params["bn2"])
    s3, b3 = fold_bn(params["bn3"])
    op = 1 if stride > 1 else 0
    out = jax.nn.relu(_convT_ref(x, params["conv1"], 1, 0, 0) * s1 + b1)
    out = jax.nn.relu(_convT_ref(out, params["conv2"], stride, 1, op) * s2 + b2)
    out = _convT_ref(out, params["conv3"], 1, 0, 0) * s3 + b3
    if has_down:
        sd, bd = fold_bn(params["down_bn"])
        ident = _convT_ref(x, params["down_conv"], stride, 0, op) * sd + bd
    else:
        ident = x
    y = jax.nn.relu(out + ident)
    return jnp.transpose(y, (0, 3, 1, 2))


# ----------------------------------------------------------------------------
if __name__ == "__main__":
    root = jax.random.PRNGKey(0)
    kp_a, kp_b, kx_a, kx_b = jax.random.split(root, 4)

    # (name, in_channels, intermediate_channels, stride, H, key_params, key_x)
    configs = [
        ("stride2_downsample", 128, 256, 2, 8, kp_a, kx_a),
        ("stride1_identity", 64, 256, 1, 8, kp_b, kx_b),
    ]

    for name, in_c, inter, stride, H, kp, kx in configs:
        params, has_down, mid = init_block_params(kp, in_c, inter, stride)
        prep = prepare_block(params, stride, has_down)
        x = jax.random.normal(kx, (2, in_c, H, H), jnp.float32)  # NCHW like PyTorch

        fwd = jax.jit(functools.partial(decoder_block_forward, mid=mid,
                                        stride=stride, has_down=has_down))
        out = jax.block_until_ready(fwd(prep, x))
        ref = decoder_block_ref(params, x, stride, has_down)

        Ho = H * stride
        assert out.shape == (2, mid, Ho, Ho), (name, out.shape)
        assert bool(jnp.all(jnp.isfinite(out))), name
        err = float(jnp.max(jnp.abs(out - ref)))
        scale = float(jnp.max(jnp.abs(ref)))
        assert err <= 0.1 * scale + 1e-2, (name, err, scale)

    print("KERNEL_OK")
</pallas_src>

<mosaic_0001>
module attributes {stable_mosaic.version = 11 : i64} {
  func.func @_mm_bias_act_kernel(%arg0: i32, %arg1: i32, %arg2: i32, %arg3: memref<128x128xbf16, #tpu.memory_space<vmem>>, %arg4: memref<128x128xbf16, #tpu.memory_space<vmem>>, %arg5: memref<1x128xf32, #tpu.memory_space<vmem>>, %arg6: memref<128x128xbf16, #tpu.memory_space<vmem>>, %arg7: memref<128x128xf32, #tpu.memory_space<vmem>>) attributes {dimension_semantics = [#tpu.dimension_semantics<parallel>, #tpu.dimension_semantics<parallel>, #tpu.dimension_semantics<arbitrary>], iteration_bounds = array<i64: 1, 1, 1>, scalar_prefetch = 0 : i64, scratch_operands = 1 : i64, tpu.core_type = #tpu.core_type<tc>, window_params = [{transform_indices = @transform_0, window_bounds = array<i64: 128, 128>}, {transform_indices = @transform_1, window_bounds = array<i64: 128, 128>}, {transform_indices = @transform_2, window_bounds = array<i64: 1, 128>}, {transform_indices = @transform_3, window_bounds = array<i64: 128, 128>}]} {
    %c0_i32 = arith.constant 0 : i32
    %0 = arith.cmpi eq, %arg2, %c0_i32 : i32
    %1 = arith.extui %0 : i1 to i32
    %c0_i32_0 = arith.constant 0 : i32
    %2 = arith.cmpi ne, %1, %c0_i32_0 : i32
    scf.if %2 {
      %cst_10 = arith.constant 0.000000e+00 : f32
      %12 = vector.broadcast %cst_10 : f32 to vector<128x128xf32>
      %c0_11 = arith.constant 0 : index
      %c0_12 = arith.constant 0 : index
      %13 = vector.load %arg7[%c0_11, %c0_12] : memref<128x128xf32, #tpu.memory_space<vmem>>, vector<128x128xf32>
      tpu.vector_store %arg7[%c0_11, %c0_12], %12 {strides = array<i32>} : memref<128x128xf32, #tpu.memory_space<vmem>>, vector<128x128xf32>,
    } else {
    }
    %c0 = arith.constant 0 : index
    %c0_1 = arith.constant 0 : index
    %3 = vector.load %arg7[%c0, %c0_1] : memref<128x128xf32, #tpu.memory_space<vmem>>, vector<128x128xf32>
    %c0_2 = arith.constant 0 : index
    %c0_3 = arith.constant 0 : index
    %4 = vector.load %arg3[%c0_2, %c0_3] : memref<128x128xbf16, #tpu.memory_space<vmem>>, vector<128x128xbf16>
    %c0_4 = arith.constant 0 : index
    %c0_5 = arith.constant 0 : index
    %5 = vector.load %arg4[%c0_4, %c0_5] : memref<128x128xbf16, #tpu.memory_space<vmem>>, vector<128x128xbf16>
    %cst = arith.constant dense<0.000000e+00> : vector<128x128xf32>
    %6 = tpu.matmul %4, %5, %cst {dimension_numbers = #tpu.dot_dimension_numbers<[1], [0], [0], [1], [0, 0, 1, 1], [], []>} : vector<128x128xbf16>, vector<128x128xbf16>, vector<128x128xf32> -> vector<128x128xf32>
    %7 = arith.addf %3, %6 : vector<128x128xf32>
    %c0_6 = arith.constant 0 : index
    %c0_7 = arith.constant 0 : index
    %8 = vector.load %arg7[%c0_6, %c0_7] : memref<128x128xf32, #tpu.memory_space<vmem>>, vector<128x128xf32>
    tpu.vector_store %arg7[%c0_6, %c0_7], %7 {strides = array<i32>} : memref<128x128xf32, #tpu.memory_space<vmem>>, vector<128x128xf32>,
    %c0_i32_8 = arith.constant 0 : i32
    %9 = arith.cmpi eq, %arg2, %c0_i32_8 : i32
    %10 = arith.extui %9 : i1 to i32
    %c0_i32_9 = arith.constant 0 : i32
    %11 = arith.cmpi ne, %10, %c0_i32_9 : i32
    scf.if %11 {
      %c0_10 = arith.constant 0 : index
      %c0_11 = arith.constant 0 : index
      %12 = vector.load %arg7[%c0_10, %c0_11] : memref<128x128xf32, #tpu.memory_space<vmem>>, vector<128x128xf32>
      %c0_12 = arith.constant 0 : index
      %c0_13 = arith.constant 0 : index
      %13 = vector.load %arg5[%c0_12, %c0_13] : memref<1x128xf32, #tpu.memory_space<vmem>>, vector<1x128xf32>
      %14 = vector.broadcast %13 : vector<1x128xf32> to vector<128x128xf32>
      %15 = arith.addf %12, %14 : vector<128x128xf32>
      %cst_14 = arith.constant 0.000000e+00 : f32
      %16 = vector.broadcast %cst_14 : f32 to vector<128x128xf32>
      %17 = arith.maximumf %15, %16 : vector<128x128xf32>
      %18 = arith.truncf %17 : vector<128x128xf32> to vector<128x128xbf16>
      %c0_15 = arith.constant 0 : index
      %c0_16 = arith.constant 0 : index
      %19 = vector.load %arg6[%c0_15, %c0_16] : memref<128x128xbf16, #tpu.memory_space<vmem>>, vector<128x128xbf16>
      tpu.vector_store %arg6[%c0_15, %c0_16], %18 {strides = array<i32>} : memref<128x128xbf16, #tpu.memory_space<vmem>>, vector<128x128xbf16>,
    } else {
    }
    return
  }
  func.func @transform_0(%arg0: i32, %arg1: i32, %arg2: i32) -> (i32, i32) {
    %c0_i32 = arith.constant 0 : i32
    return %arg0, %arg2 : i32, i32
  }
  func.func @transform_1(%arg0: i32, %arg1: i32, %arg2: i32) -> (i32, i32) {
    %c0_i32 = arith.constant 0 : i32
    return %arg2, %arg1 : i32, i32
  }
  func.func @transform_2(%arg0: i32, %arg1: i32, %arg2: i32) -> (i32, i32) {
    %c0_i32 = arith.constant 0 : i32
    %c0_i32_0 = arith.constant 0 : i32
    return %c0_i32, %arg1 : i32, i32
  }
  func.func @transform_3(%arg0: i32, %arg1: i32, %arg2: i32) -> (i32, i32) {
    %c0_i32 = arith.constant 0 : i32
    return %arg0, %arg1 : i32, i32
  }
}

module attributes {stable_mosaic.version = 11 : i64} {
  func.func @_mm_bias_act_kernel(%arg0: i32, %arg1: i32, %arg2: i32, %arg3: memref<128x128xbf16, #tpu.memory_space<vmem>>, %arg4: memref<128x128xbf16, #tpu.memory_space<vmem>>, %arg5: memref<1x128xf32, #tpu.memory_space<vmem>>, %arg6: memref<128x128xbf16, #tpu.memory_space<vmem>>, %arg7: memref<128x128xf32, #tpu.memory_space<vmem>>) attributes {dimension_semantics = [#tpu.dimension_semantics<parallel>, #tpu.dimension_semantics<parallel>, #tpu.dimension_semantics<arbitrary>], iteration_bounds = array<i64: 1, 1, 1>, scalar_prefetch = 0 : i64, scratch_operands = 1 : i64, tpu.core_type = #tpu.core_type<tc>, window_params = [{transform_indices = @transform_0, window_bounds = array<i64: 128, 128>}, {transform_indices = @transform_1, window_bounds = array<i64: 128, 128>}, {transform_indices = @transform_2, window_bounds = array<i64: 1, 128>}, {transform_indices = @transform_3, window_bounds = array<i64: 128, 128>}]} {
    %c0_i32 = arith.constant 0 : i32
    %0 = arith.cmpi eq, %arg2, %c0_i32 : i32
    %1 = arith.extui %0 : i1 to i32
    %c0_i32_0 = arith.constant 0 : i32
    %2 = arith.cmpi ne, %1, %c0_i32_0 : i32
    scf.if %2 {
      %cst_10 = arith.constant 0.000000e+00 : f32
      %12 = vector.broadcast %cst_10 : f32 to vector<128x128xf32>
      %c0_11 = arith.constant 0 : index
      %c0_12 = arith.constant 0 : index
      %13 = vector.load %arg7[%c0_11, %c0_12] : memref<128x128xf32, #tpu.memory_space<vmem>>, vector<128x128xf32>
      tpu.vector_store %arg7[%c0_11, %c0_12], %12 {strides = array<i32>} : memref<128x128xf32, #tpu.memory_space<vmem>>, vector<128x128xf32>,
    } else {
    }
    %c0 = arith.constant 0 : index
    %c0_1 = arith.constant 0 : index
    %3 = vector.load %arg7[%c0, %c0_1] : memref<128x128xf32, #tpu.memory_space<vmem>>, vector<128x128xf32>
    %c0_2 = arith.constant 0 : index
    %c0_3 = arith.constant 0 : index
    %4 = vector.load %arg3[%c0_2, %c0_3] : memref<128x128xbf16, #tpu.memory_space<vmem>>, vector<128x128xbf16>
    %c0_4 = arith.constant 0 : index
    %c0_5 = arith.constant 0 : index
    %5 = vector.load %arg4[%c0_4, %c0_5] : memref<128x128xbf16, #tpu.memory_space<vmem>>, vector<128x128xbf16>
    %cst = arith.constant dense<0.000000e+00> : vector<128x128xf32>
    %6 = tpu.matmul %4, %5, %cst {dimension_numbers = #tpu.dot_dimension_numbers<[1], [0], [0], [1], [0, 0, 1, 1], [], []>} : vector<128x128xbf16>, vector<128x128xbf16>, vector<128x128xf32> -> vector<128x128xf32>
    %7 = arith.addf %3, %6 : vector<128x128xf32>
    %c0_6 = arith.constant 0 : index
    %c0_7 = arith.constant 0 : index
    %8 = vector.load %arg7[%c0_6, %c0_7] : memref<128x128xf32, #tpu.memory_space<vmem>>, vector<128x128xf32>
    tpu.vector_store %arg7[%c0_6, %c0_7], %7 {strides = array<i32>} : memref<128x128xf32, #tpu.memory_space<vmem>>, vector<128x128xf32>,
    %c0_i32_8 = arith.constant 0 : i32
    %9 = arith.cmpi eq, %arg2, %c0_i32_8 : i32
    %10 = arith.extui %9 : i1 to i32
    %c0_i32_9 = arith.constant 0 : i32
    %11 = arith.cmpi ne, %10, %c0_i32_9 : i32
    scf.if %11 {
      %c0_10 = arith.constant 0 : index
      %c0_11 = arith.constant 0 : index
      %12 = vector.load %arg7[%c0_10, %c0_11] : memref<128x128xf32, #tpu.memory_space<vmem>>, vector<128x128xf32>
      %c0_12 = arith.constant 0 : index
      %c0_13 = arith.constant 0 : index
      %13 = vector.load %arg5[%c0_12, %c0_13] : memref<1x128xf32, #tpu.memory_space<vmem>>, vector<1x128xf32>
      %14 = vector.broadcast %13 : vector<1x128xf32> to vector<128x128xf32>
      %15 = arith.addf %12, %14 : vector<128x128xf32>
      %16 = arith.truncf %15 : vector<128x128xf32> to vector<128x128xbf16>
      %c0_14 = arith.constant 0 : index
      %c0_15 = arith.constant 0 : index
      %17 = vector.load %arg6[%c0_14, %c0_15] : memref<128x128xbf16, #tpu.memory_space<vmem>>, vector<128x128xbf16>
      tpu.vector_store %arg6[%c0_14, %c0_15], %16 {strides = array<i32>} : memref<128x128xbf16, #tpu.memory_space<vmem>>, vector<128x128xbf16>,
    } else {
    }
    return
  }
  func.func @transform_0(%arg0: i32, %arg1: i32, %arg2: i32) -> (i32, i32) {
    %c0_i32 = arith.constant 0 : i32
    return %arg0, %arg2 : i32, i32
  }
  func.func @transform_1(%arg0: i32, %arg1: i32, %arg2: i32) -> (i32, i32) {
    %c0_i32 = arith.constant 0 : i32
    return %arg2, %arg1 : i32, i32
  }
  func.func @transform_2(%arg0: i32, %arg1: i32, %arg2: i32) -> (i32, i32) {
    %c0_i32 = arith.constant 0 : i32
    %c0_i32_0 = arith.constant 0 : i32
    return %c0_i32, %arg1 : i32, i32
  }
  func.func @transform_3(%arg0: i32, %arg1: i32, %arg2: i32) -> (i32, i32) {
    %c0_i32 = arith.constant 0 : i32
    return %arg0, %arg1 : i32, i32
  }
}

module attributes {stable_mosaic.version = 11 : i64} {
  func.func @_mm_bias_act_kernel(%arg0: i32, %arg1: i32, %arg2: i32, %arg3: memref<128x256xbf16, #tpu.memory_space<vmem>>, %arg4: memref<256x128xbf16, #tpu.memory_space<vmem>>, %arg5: memref<1x128xf32, #tpu.memory_space<vmem>>, %arg6: memref<128x128xbf16, #tpu.memory_space<vmem>>, %arg7: memref<128x128xf32, #tpu.memory_space<vmem>>) attributes {dimension_semantics = [#tpu.dimension_semantics<parallel>, #tpu.dimension_semantics<parallel>, #tpu.dimension_semantics<arbitrary>], iteration_bounds = array<i64: 1, 1, 1>, scalar_prefetch = 0 : i64, scratch_operands = 1 : i64, tpu.core_type = #tpu.core_type<tc>, window_params = [{transform_indices = @transform_0, window_bounds = array<i64: 128, 256>}, {transform_indices = @transform_1, window_bounds = array<i64: 256, 128>}, {transform_indices = @transform_2, window_bounds = array<i64: 1, 128>}, {transform_indices = @transform_3, window_bounds = array<i64: 128, 128>}]} {
    %c0_i32 = arith.constant 0 : i32
    %0 = arith.cmpi eq, %arg2, %c0_i32 : i32
    %1 = arith.extui %0 : i1 to i32
    %c0_i32_0 = arith.constant 0 : i32
    %2 = arith.cmpi ne, %1, %c0_i32_0 : i32
    scf.if %2 {
      %cst_10 = arith.constant 0.000000e+00 : f32
      %12 = vector.broadcast %cst_10 : f32 to vector<128x128xf32>
      %c0_11 = arith.constant 0 : index
      %c0_12 = arith.constant 0 : index
      %13 = vector.load %arg7[%c0_11, %c0_12] : memref<128x128xf32, #tpu.memory_space<vmem>>, vector<128x128xf32>
      tpu.vector_store %arg7[%c0_11, %c0_12], %12 {strides = array<i32>} : memref<128x128xf32, #tpu.memory_space<vmem>>, vector<128x128xf32>,
    } else {
    }
    %c0 = arith.constant 0 : index
    %c0_1 = arith.constant 0 : index
    %3 = vector.load %arg7[%c0, %c0_1] : memref<128x128xf32, #tpu.memory_space<vmem>>, vector<128x128xf32>
    %c0_2 = arith.constant 0 : index
    %c0_3 = arith.constant 0 : index
    %4 = vector.load %arg3[%c0_2, %c0_3] : memref<128x256xbf16, #tpu.memory_space<vmem>>, vector<128x256xbf16>
    %c0_4 = arith.constant 0 : index
    %c0_5 = arith.constant 0 : index
    %5 = vector.load %arg4[%c0_4, %c0_5] : memref<256x128xbf16, #tpu.memory_space<vmem>>, vector<256x128xbf16>
    %cst = arith.constant dense<0.000000e+00> : vector<128x128xf32>
    %6 = tpu.matmul %4, %5, %cst {dimension_numbers = #tpu.dot_dimension_numbers<[1], [0], [0], [1], [0, 0, 1, 1], [], []>} : vector<128x256xbf16>, vector<256x128xbf16>, vector<128x128xf32> -> vector<128x128xf32>
    %7 = arith.addf %3, %6 : vector<128x128xf32>
    %c0_6 = arith.constant 0 : index
    %c0_7 = arith.constant 0 : index
    %8 = vector.load %arg7[%c0_6, %c0_7] : memref<128x128xf32, #tpu.memory_space<vmem>>, vector<128x128xf32>
    tpu.vector_store %arg7[%c0_6, %c0_7], %7 {strides = array<i32>} : memref<128x128xf32, #tpu.memory_space<vmem>>, vector<128x128xf32>,
    %c0_i32_8 = arith.constant 0 : i32
    %9 = arith.cmpi eq, %arg2, %c0_i32_8 : i32
    %10 = arith.extui %9 : i1 to i32
    %c0_i32_9 = arith.constant 0 : i32
    %11 = arith.cmpi ne, %10, %c0_i32_9 : i32
    scf.if %11 {
      %c0_10 = arith.constant 0 : index
      %c0_11 = arith.constant 0 : index
      %12 = vector.load %arg7[%c0_10, %c0_11] : memref<128x128xf32, #tpu.memory_space<vmem>>, vector<128x128xf32>
      %c0_12 = arith.constant 0 : index
      %c0_13 = arith.constant 0 : index
      %13 = vector.load %arg5[%c0_12, %c0_13] : memref<1x128xf32, #tpu.memory_space<vmem>>, vector<1x128xf32>
      %14 = vector.broadcast %13 : vector<1x128xf32> to vector<128x128xf32>
      %15 = arith.addf %12, %14 : vector<128x128xf32>
      %cst_14 = arith.constant 0.000000e+00 : f32
      %16 = vector.broadcast %cst_14 : f32 to vector<128x128xf32>
      %17 = arith.maximumf %15, %16 : vector<128x128xf32>
      %18 = arith.truncf %17 : vector<128x128xf32> to vector<128x128xbf16>
      %c0_15 = arith.constant 0 : index
      %c0_16 = arith.constant 0 : index
      %19 = vector.load %arg6[%c0_15, %c0_16] : memref<128x128xbf16, #tpu.memory_space<vmem>>, vector<128x128xbf16>
      tpu.vector_store %arg6[%c0_15, %c0_16], %18 {strides = array<i32>} : memref<128x128xbf16, #tpu.memory_space<vmem>>, vector<128x128xbf16>,
    } else {
    }
    return
  }
  func.func @transform_0(%arg0: i32, %arg1: i32, %arg2: i32) -> (i32, i32) {
    %c0_i32 = arith.constant 0 : i32
    return %arg0, %arg2 : i32, i32
  }
  func.func @transform_1(%arg0: i32, %arg1: i32, %arg2: i32) -> (i32, i32) {
    %c0_i32 = arith.constant 0 : i32
    return %arg2, %arg1 : i32, i32
  }
  func.func @transform_2(%arg0: i32, %arg1: i32, %arg2: i32) -> (i32, i32) {
    %c0_i32 = arith.constant 0 : i32
    %c0_i32_0 = arith.constant 0 : i32
    return %c0_i32, %arg1 : i32, i32
  }
  func.func @transform_3(%arg0: i32, %arg1: i32, %arg2: i32) -> (i32, i32) {
    %c0_i32 = arith.constant 0 : i32
    return %arg0, %arg1 : i32, i32
  }
}

module attributes {stable_mosaic.version = 11 : i64} {
  func.func @_mm_bias_act_kernel(%arg0: i32, %arg1: i32, %arg2: i32, %arg3: memref<128x128xbf16, #tpu.memory_space<vmem>>, %arg4: memref<128x128xbf16, #tpu.memory_space<vmem>>, %arg5: memref<1x128xf32, #tpu.memory_space<vmem>>, %arg6: memref<128x128xbf16, #tpu.memory_space<vmem>>, %arg7: memref<128x128xf32, #tpu.memory_space<vmem>>, %arg8: memref<128x128xf32, #tpu.memory_space<vmem>>) attributes {dimension_semantics = [#tpu.dimension_semantics<parallel>, #tpu.dimension_semantics<parallel>, #tpu.dimension_semantics<arbitrary>], iteration_bounds = array<i64: 4, 1, 1>, scalar_prefetch = 0 : i64, scratch_operands = 1 : i64, tpu.core_type = #tpu.core_type<tc>, window_params = [{transform_indices = @transform_0, window_bounds = array<i64: 128, 128>}, {transform_indices = @transform_1, window_bounds = array<i64: 128, 128>}, {transform_indices = @transform_2, window_bounds = array<i64: 1, 128>}, {transform_indices = @transform_3, window_bounds = array<i64: 128, 128>}, {transform_indices = @transform_4, window_bounds = array<i64: 128, 128>}]} {
    %c0_i32 = arith.constant 0 : i32
    %0 = arith.cmpi eq, %arg2, %c0_i32 : i32
    %1 = arith.extui %0 : i1 to i32
    %c0_i32_0 = arith.constant 0 : i32
    %2 = arith.cmpi ne, %1, %c0_i32_0 : i32
    scf.if %2 {
      %cst_10 = arith.constant 0.000000e+00 : f32
      %12 = vector.broadcast %cst_10 : f32 to vector<128x128xf32>
      %c0_11 = arith.constant 0 : index
      %c0_12 = arith.constant 0 : index
      %13 = vector.load %arg8[%c0_11, %c0_12] : memref<128x128xf32, #tpu.memory_space<vmem>>, vector<128x128xf32>
      tpu.vector_store %arg8[%c0_11, %c0_12], %12 {strides = array<i32>} : memref<128x128xf32, #tpu.memory_space<vmem>>, vector<128x128xf32>,
    } else {
    }
    %c0 = arith.constant 0 : index
    %c0_1 = arith.constant 0 : index
    %3 = vector.load %arg8[%c0, %c0_1] : memref<128x128xf32, #tpu.memory_space<vmem>>, vector<128x128xf32>
    %c0_2 = arith.constant 0 : index
    %c0_3 = arith.constant 0 : index
    %4 = vector.load %arg3[%c0_2, %c0_3] : memref<128x128xbf16, #tpu.memory_space<vmem>>, vector<128x128xbf16>
    %c0_4 = arith.constant 0 : index
    %c0_5 = arith.constant 0 : index
    %5 = vector.load %arg4[%c0_4, %c0_5] : memref<128x128xbf16, #tpu.memory_space<vmem>>, vector<128x128xbf16>
    %cst = arith.constant dense<0.000000e+00> : vector<128x128xf32>
    %6 = tpu.matmul %4, %5, %cst {dimension_numbers = #tpu.dot_dimension_numbers<[1], [0], [0], [1], [0, 0, 1, 1], [], []>} : vector<128x128xbf16>, vector<128x128xbf16>, vector<128x128xf32> -> vector<128x128xf32>
    %7 = arith.addf %3, %6 : vector<128x128xf32>
    %c0_6 = arith.constant 0 : index
    %c0_7 = arith.constant 0 : index
    %8 = vector.load %arg8[%c0_6, %c0_7] : memref<128x128xf32, #tpu.memory_space<vmem>>, vector<128x128xf32>
    tpu.vector_store %arg8[%c0_6, %c0_7], %7 {strides = array<i32>} : memref<128x128xf32, #tpu.memory_space<vmem>>, vector<128x128xf32>,
    %c0_i32_8 = arith.constant 0 : i32
    %9 = arith.cmpi eq, %arg2, %c0_i32_8 : i32
    %10 = arith.extui %9 : i1 to i32
    %c0_i32_9 = arith.constant 0 : i32
    %11 = arith.cmpi ne, %10, %c0_i32_9 : i32
    scf.if %11 {
      %c0_10 = arith.constant 0 : index
      %c0_11 = arith.constant 0 : index
      %12 = vector.load %arg8[%c0_10, %c0_11] : memref<128x128xf32, #tpu.memory_space<vmem>>, vector<128x128xf32>
      %c0_12 = arith.constant 0 : index
      %c0_13 = arith.constant 0 : index
      %13 = vector.load %arg5[%c0_12, %c0_13] : memref<1x128xf32, #tpu.memory_space<vmem>>, vector<1x128xf32>
      %14 = vector.broadcast %13 : vector<1x128xf32> to vector<128x128xf32>
      %15 = arith.addf %12, %14 : vector<128x128xf32>
      %c0_14 = arith.constant 0 : index
      %c0_15 = arith.constant 0 : index
      %16 = vector.load %arg6[%c0_14, %c0_15] : memref<128x128xbf16, #tpu.memory_space<vmem>>, vector<128x128xbf16>
      %17 = arith.extf %16 : vector<128x128xbf16> to vector<128x128xf32>
      %18 = arith.addf %15, %17 : vector<128x128xf32>
      %cst_16 = arith.constant 0.000000e+00 : f32
      %19 = vector.broadcast %cst_16 : f32 to vector<128x128xf32>
      %20 = arith.maximumf %18, %19 : vector<128x128xf32>
      %c0_17 = arith.constant 0 : index
      %c0_18 = arith.constant 0 : index
      %21 = vector.load %arg7[%c0_17, %c0_18] : memref<128x128xf32, #tpu.memory_space<vmem>>, vector<128x128xf32>
      tpu.vector_store %arg7[%c0_17, %c0_18], %20 {strides = array<i32>} : memref<128x128xf32, #tpu.memory_space<vmem>>, vector<128x128xf32>,
    } else {
    }
    return
  }
  func.func @transform_0(%arg0: i32, %arg1: i32, %arg2: i32) -> (i32, i32) {
    %c0_i32 = arith.constant 0 : i32
    return %arg0, %arg2 : i32, i32
  }
  func.func @transform_1(%arg0: i32, %arg1: i32, %arg2: i32) -> (i32, i32) {
    %c0_i32 = arith.constant 0 : i32
    return %arg2, %arg1 : i32, i32
  }
  func.func @transform_2(%arg0: i32, %arg1: i32, %arg2: i32) -> (i32, i32) {
    %c0_i32 = arith.constant 0 : i32
    %c0_i32_0 = arith.constant 0 : i32
    return %c0_i32, %arg1 : i32, i32
  }
  func.func @transform_3(%arg0: i32, %arg1: i32, %arg2: i32) -> (i32, i32) {
    %c0_i32 = arith.constant 0 : i32
    return %arg0, %arg1 : i32, i32
  }
  func.func @transform_4(%arg0: i32, %arg1: i32, %arg2: i32) -> (i32, i32) {
    %c0_i32 = arith.constant 0 : i32
    return %arg0, %arg1 : i32, i32
  }
}

</mosaic_0001>

<llo_original>
// kernel: decoder_block_forward.7
$region0: #{decoder_block_forward.7}
  #allocation0 [shape = 'u32[]', space=smem, size = 0x4, offset = 0x4, fixed_abs, tag = 'smem constant byte address 0x4 - core index']
  #allocation1 [shape = 'u32[144,128]{1,0:T(1,128)}', space=vmem, size = 0x12000, scoped, tag = 'internal scratch']
  #allocation2 [shape = 'f32[128,128]{1,0:T(8,128)}', space=vmem, size = 0x10000, scoped, tag = 'scratch operand']
  %s0 = inlined_call_operand.vmem [shape: bf16[128,128], index: 0, kind: input, shape index: {}]
  %s1 = inlined_call_operand.vmem [shape: bf16[128,128], index: 1, kind: input, shape index: {}]
  %s2 = inlined_call_operand.vmem [shape: f32[1,128], index: 2, kind: input, shape index: {}]
  %s3 = inlined_call_operand.vmem [shape: bf16[128,128], index: 3, kind: output, shape index: {}]
  %s4 = sld [smem:[#allocation0]]
  $region30: #{decoder_block_forward.7} parent=0
    _
  %s6 = ssub.s32 1, %s4
  %s7 = scalar_select 0, %s6, %s4
  // Predicated region
  $region2: #{decoder_block_forward.7} parent=0 // pred_check
    _
  $region3: #{decoder_block_forward.7} parent=0 // pred_check_branch
    %9 = sbr.rel (0) target = $region5
  $region4: #{decoder_block_forward.7} parent=0 // pred_region
    _
  $region5: #{decoder_block_forward.7} parent=0 // pred_fallthru
    _
  // Predicated region
  $region6: #{decoder_block_forward.7} parent=0 // pred_check
    _
  $region7: #{decoder_block_forward.7} parent=0 // pred_check_branch
    %11 = sbr.rel (0) target = $region9
  $region8: #{decoder_block_forward.7} parent=0 // pred_region
    _
  $region9: #{decoder_block_forward.7} parent=0 // pred_fallthru
    _
  // Predicated region
  $region10: #{decoder_block_forward.7} parent=0 // pred_check
    _
  $region11: #{decoder_block_forward.7} parent=0 // pred_check_branch
    %13 = sbr.rel (0) target = $region13
  $region12: #{decoder_block_forward.7} parent=0 // pred_region
    _
  $region13: #{decoder_block_forward.7} parent=0 // pred_fallthru
    _
  %p15 = scmp.eq.s32.totalorder 0, 0
  // Predicated region
  $region14: #{decoder_block_forward.7} parent=0 // pred_check
    %p16 = pneg %p15
  $region15: #{decoder_block_forward.7} parent=0 // pred_check_branch
    %18 = sbr.rel (%p16) target = $region17
  $region16: #{decoder_block_forward.7} parent=0 // pred_region
    %19 = vst [vmem:[#allocation2] sm:$0xff] 0.0
    %20 = vst [vmem:[#allocation2 + $0x8] sm:$0xff] 0.0
    %21 = vst [vmem:[#allocation2 + $0x10] sm:$0xff] 0.0
    %22 = vst [vmem:[#allocation2 + $0x18] sm:$0xff] 0.0
    %23 = vst [vmem:[#allocation2 + $0x20] sm:$0xff] 0.0
    %24 = vst [vmem:[#allocation2 + $0x28] sm:$0xff] 0.0
    %25 = vst [vmem:[#allocation2 + $0x30] sm:$0xff] 0.0
    %26 = vst [vmem:[#allocation2 + $0x38] sm:$0xff] 0.0
    %27 = vst [vmem:[#allocation2 + $0x40] sm:$0xff] 0.0
    %28 = vst [vmem:[#allocation2 + $0x48] sm:$0xff] 0.0
    %29 = vst [vmem:[#allocation2 + $0x50] sm:$0xff] 0.0
    %30 = vst [vmem:[#allocation2 + $0x58] sm:$0xff] 0.0
    %31 = vst [vmem:[#allocation2 + $0x60] sm:$0xff] 0.0
    %32 = vst [vmem:[#allocation2 + $0x68] sm:$0xff] 0.0
    %33 = vst [vmem:[#allocation2 + $0x70] sm:$0xff] 0.0
    %34 = vst [vmem:[#allocation2 + $0x78] sm:$0xff] 0.0
  $region17: #{decoder_block_forward.7} parent=0 // pred_fallthru
    _
  %v35 = vld [vmem:[#allocation2] sm:$0xff]
  %v36 = vld [vmem:[#allocation2 + $0x8] sm:$0xff]
  %v37 = vld [vmem:[#allocation2 + $0x10] sm:$0xff]
  %v38 = vld [vmem:[#allocation2 + $0x18] sm:$0xff]
  %v39 = vld [vmem:[#allocation2 + $0x20] sm:$0xff]
  %v40 = vld [vmem:[#allocation2 + $0x28] sm:$0xff]
  %v41 = vld [vmem:[#allocation2 + $0x30] sm:$0xff]
  %v42 = vld [vmem:[#allocation2 + $0x38] sm:$0xff]
  %v43 = vld [vmem:[#allocation2 + $0x40] sm:$0xff]
  %v44 = vld [vmem:[#allocation2 + $0x48] sm:$0xff]
  %v45 = vld [vmem:[#allocation2 + $0x50] sm:$0xff]
  %v46 = vld [vmem:[#allocation2 + $0x58] sm:$0xff]
  %v47 = vld [vmem:[#allocation2 + $0x60] sm:$0xff]
  %v48 = vld [vmem:[#allocation2 + $0x68] sm:$0xff]
  %v49 = vld [vmem:[#allocation2 + $0x70] sm:$0xff]
  %v50 = vld [vmem:[#allocation2 + $0x78] sm:$0xff]
  %v51 = vld [vmem:[%s0] sm:$0xf]
  %v52 = vld [vmem:[%s0 + $0x4] sm:$0xf]
  %v53 = vld [vmem:[%s0 + $0x8] sm:$0xf]
  %v54 = vld [vmem:[%s0 + $0xc] sm:$0xf]
  %v55 = vld [vmem:[%s0 + $0x10] sm:$0xf]
  %v56 = vld [vmem:[%s0 + $0x14] sm:$0xf]
  %v57 = vld [vmem:[%s0 + $0x18] sm:$0xf]
  %v58 = vld [vmem:[%s0 + $0x1c] sm:$0xf]
  %v59 = vld [vmem:[%s0 + $0x20] sm:$0xf]
  %v60 = vld [vmem:[%s0 + $0x24] sm:$0xf]
  %v61 = vld [vmem:[%s0 + $0x28] sm:$0xf]
  %v62 = vld [vmem:[%s0 + $0x2c] sm:$0xf]
  %v63 = vld [vmem:[%s0 + $0x30] sm:$0xf]
  %v64 = vld [vmem:[%s0 + $0x34] sm:$0xf]
  %v65 = vld [vmem:[%s0 + $0x38] sm:$0xf]
  %v66 = vld [vmem:[%s0 + $0x3c] sm:$0xf]
  %v67 = vld [vmem:[%s1] sm:$0xf]
  %v68 = vld [vmem:[%s1 + $0x4] sm:$0xf]
  %v69 = vld [vmem:[%s1 + $0x8] sm:$0xf]
  %v70 = vld [vmem:[%s1 + $0xc] sm:$0xf]
  %v71 = vld [vmem:[%s1 + $0x10] sm:$0xf]
  %v72 = vld [vmem:[%s1 + $0x14] sm:$0xf]
  %v73 = vld [vmem:[%s1 + $0x18] sm:$0xf]
  %v74 = vld [vmem:[%s1 + $0x1c] sm:$0xf]
  %v75 = vld [vmem:[%s1 + $0x20] sm:$0xf]
  %v76 = vld [vmem:[%s1 + $0x24] sm:$0xf]
  %v77 = vld [vmem:[%s1 + $0x28] sm:$0xf]
  %v78 = vld [vmem:[%s1 + $0x2c] sm:$0xf]
  %v79 = vld [vmem:[%s1 + $0x30] sm:$0xf]
  %v80 = vld [vmem:[%s1 + $0x34] sm:$0xf]
  %v81 = vld [vmem:[%s1 + $0x38] sm:$0xf]
  %v82 = vld [vmem:[%s1 + $0x3c] sm:$0xf]
  %v99 = vunpack.c.l.b16 %v51
  %v100 = vunpack.c.l.b16 %v52
  %v101 = vunpack.c.l.b16 %v53
  %v102 = vunpack.c.l.b16 %v54
  %v103 = vunpack.c.l.b16 %v55
  %v104 = vunpack.c.l.b16 %v56
  %v105 = vunpack.c.l.b16 %v57
  %v106 = vunpack.c.l.b16 %v58
  %v107 = vunpack.c.l.b16 %v59
  %v108 = vunpack.c.l.b16 %v60
  %v109 = vunpack.c.l.b16 %v61
  %v110 = vunpack.c.l.b16 %v62
  %v111 = vunpack.c.l.b16 %v63
  %v112 = vunpack.c.l.b16 %v64
  %v113 = vunpack.c.l.b16 %v65
  %v114 = vunpack.c.l.b16 %v66
  %v115 = vpack.c.b16 %v100, %v99
  %v116 = vpack.c.b16 %v102, %v101
  %v117 = vpack.c.b16 %v104, %v103
  %v118 = vpack.c.b16 %v106, %v105
  %v119 = vpack.c.b16 %v108, %v107
  %v120 = vpack.c.b16 %v110, %v109
  %v121 = vpack.c.b16 %v112, %v111
  %v122 = vpack.c.b16 %v114, %v113
  %v147 = vunpack.c.l.b16 %v67
  %v148 = vunpack.c.l.b16 %v68
  %v149 = vunpack.c.l.b16 %v69
  %v150 = vunpack.c.l.b16 %v70
  %v151 = vunpack.c.l.b16 %v71
  %v152 = vunpack.c.l.b16 %v72
  %v153 = vunpack.c.l.b16 %v73
  %v154 = vunpack.c.l.b16 %v74
  %v155 = vunpack.c.l.b16 %v75
  %v156 = vunpack.c.l.b16 %v76
  %v157 = vunpack.c.l.b16 %v77
  %v158 = vunpack.c.l.b16 %v78
  %v159 = vunpack.c.l.b16 %v79
  %v160 = vunpack.c.l.b16 %v80
  %v161 = vunpack.c.l.b16 %v81
  %v162 = vunpack.c.l.b16 %v82
  %v163 = vpack.c.b16 %v148, %v147
  %v164 = vpack.c.b16 %v150, %v149
  %v165 = vpack.c.b16 %v152, %v151
  %v166 = vpack.c.b16 %v154, %v153
  %v167 = vpack.c.b16 %v156, %v155
  %v168 = vpack.c.b16 %v158, %v157
  %v169 = vpack.c.b16 %v160, %v159
  %v170 = vpack.c.b16 %v162, %v161
  %179 = vmatprep.subr.bf16.mxu0 0
  %180 = vmatpush1.bf16.msra.mxu0 %v163
  %181 = vmatprep.subr.bf16.mxu0 0
  %182 = vmatpush1.bf16.msra.mxu0 %v164
  %183 = vmatprep.subr.bf16.mxu0 0
  %184 = vmatpush1.bf16.msra.mxu0 %v165
  %185 = vmatprep.subr.bf16.mxu0 0
  %186 = vmatpush1.bf16.msra.mxu0 %v166
  %187 = vmatprep.subr.bf16.mxu0 0
  %188 = vmatpush1.bf16.msra.mxu0 %v167
  %189 = vmatprep.subr.bf16.mxu0 0
  %190 = vmatpush1.bf16.msra.mxu0 %v168
  %191 = vmatprep.subr.bf16.mxu0 0
  %192 = vmatpush1.bf16.msra.mxu0 %v169
  %193 = vmatprep.subr.bf16.mxu0 0
  %194 = vmatpush1.bf16.msra.mxu0 %v170
  %195 = vmatprep.subr.bf16.mxu0 0
  %196 = vmatpush1.bf16.msra.mxu0 0
  %197 = vmatprep.subr.bf16.mxu0 0
  %198 = vmatpush1.bf16.msra.mxu0 0
  %199 = vmatprep.subr.bf16.mxu0 0
  %200 = vmatpush1.bf16.msra.mxu0 0
  %201 = vmatprep.subr.bf16.mxu0 0
  %202 = vmatpush1.bf16.msra.mxu0 0
  %203 = vmatprep.subr.bf16.mxu0 0
  %204 = vmatpush1.bf16.msra.mxu0 0
  %205 = vmatprep.subr.bf16.mxu0 0
  %206 = vmatpush1.bf16.msra.mxu0 0
  %207 = vmatprep.subr.bf16.mxu0 0
  %208 = vmatpush1.bf16.msra.mxu0 0
  %209 = vmatprep.subr.bf16.mxu0 0
  %210 = vmatpush1.bf16.msra.mxu0 0
  %211 = vmatprep.mubr.bf16.mxu0 0
  %212 = vmatmul.mubr.bf16.gmra.mrb[0].mxu0 %v115
  %v213 = vpop.f32.mrb[0].mxu0
  %v214 = vadd.f32 0.0, %v213
  %v215 = vpop.f32.mrb[0].mxu0
  %v216 = vpop.f32.mrb[0].mxu0
  %v217 = vadd.f32 0.0, %v216
  %v218 = vpop.f32.mrb[0].mxu0
  %219 = vmatprep.mubr.bf16.mxu0 0
  %220 = vmatmul.mubr.bf16.gmra.mrb[0].mxu0 %v116
  %v221 = vpop.f32.mrb[0].mxu0
  %v222 = vadd.f32 0.0, %v221
  %v223 = vpop.f32.mrb[0].mxu0
  %v224 = vpop.f32.mrb[0].mxu0
  %v225 = vadd.f32 0.0, %v224
  %v226 = vpop.f32.mrb[0].mxu0
  %227 = vmatprep.mubr.bf16.mxu0 0
  %228 = vmatmul.mubr.bf16.gmra.mrb[0].mxu0 %v117
  %v229 = vpop.f32.mrb[0].mxu0
  %v230 = vadd.f32 0.0, %v229
  %v231 = vpop.f32.mrb[0].mxu0
  %v232 = vpop.f32.mrb[0].mxu0
  %v233 = vadd.f32 0.0, %v232
  %v234 = vpop.f32.mrb[0].mxu0
  %235 = vmatprep.mubr.bf16.mxu0 0
  %236 = vmatmul.mubr.bf16.gmra.mrb[0].mxu0 %v118
  %v237 = vpop.f32.mrb[0].mxu0
  %v238 = vadd.f32 0.0, %v237
  %v239 = vpop.f32.mrb[0].mxu0
  %v240 = vpop.f32.mrb[0].mxu0
  %v241 = vadd.f32 0.0, %v240
  %v242 = vpop.f32.mrb[0].mxu0
  %243 = vmatprep.mubr.bf16.mxu0 0
  %244 = vmatmul.mubr.bf16.gmra.mrb[0].mxu0 %v119
  %v245 = vpop.f32.mrb[0].mxu0
  %v246 = vadd.f32 0.0, %v245
  %v247 = vpop.f32.mrb[0].mxu0
  %v248 = vpop.f32.mrb[0].mxu0
  %v249 = vadd.f32 0.0, %v248
  %v250 = vpop.f32.mrb[0].mxu0
  %251 = vmatprep.mubr.bf16.mxu0 0
  %252 = vmatmul.mubr.bf16.gmra.mrb[0].mxu0 %v120
  %v253 = vpop.f32.mrb[0].mxu0
  %v254 = vadd.f32 0.0, %v253
  %v255 = vpop.f32.mrb[0].mxu0
  %v256 = vpop.f32.mrb[0].mxu0
  %v257 = vadd.f32 0.0, %v256
  %v258 = vpop.f32.mrb[0].mxu0
  %259 = vmatprep.mubr.bf16.mxu0 0
  %260 = vmatmul.mubr.bf16.gmra.mrb[0].mxu0 %v121
  %v261 = vpop.f32.mrb[0].mxu0
  %v262 = vadd.f32 0.0, %v261
  %v263 = vpop.f32.mrb[0].mxu0
  %v264 = vpop.f32.mrb[0].mxu0
  %v265 = vadd.f32 0.0, %v264
  %v266 = vpop.f32.mrb[0].mxu0
  %267 = vmatprep.mubr.bf16.mxu0 0
  %268 = vmatmul.mubr.bf16.gmra.mrb[0].mxu0 %v122
  %v269 = vpop.f32.mrb[0].mxu0
  %v270 = vadd.f32 0.0, %v269
  %v271 = vpop.f32.mrb[0].mxu0
  %v272 = vpop.f32.mrb[0].mxu0
  %v273 = vadd.f32 0.0, %v272
  %v274 = vpop.f32.mrb[0].mxu0
  %275 = vdwg.mxu0
  %v276 = vadd.f32 %v35, %v214
  %v277 = vadd.f32 %v36, %v217
  %v278 = vadd.f32 %v37, %v222
  %v279 = vadd.f32 %v38, %v225
  %v280 = vadd.f32 %v39, %v230
  %v281 = vadd.f32 %v40, %v233
  %v282 = vadd.f32 %v41, %v238
  %v283 = vadd.f32 %v42, %v241
  %v284 = vadd.f32 %v43, %v246
  %v285 = vadd.f32 %v44, %v249
  %v286 = vadd.f32 %v45, %v254
  %v287 = vadd.f32 %v46, %v257
  %v288 = vadd.f32 %v47, %v262
  %v289 = vadd.f32 %v48, %v265
  %v290 = vadd.f32 %v49, %v270
  %v291 = vadd.f32 %v50, %v273
  %292 = vst [vmem:[#allocation2] sm:$0xff] %v276
  %293 = vst [vmem:[#allocation2 + $0x8] sm:$0xff] %v277
  %294 = vst [vmem:[#allocation2 + $0x10] sm:$0xff] %v278
  %295 = vst [vmem:[#allocation2 + $0x18] sm:$0xff] %v279
  %296 = vst [vmem:[#allocation2 + $0x20] sm:$0xff] %v280
  %297 = vst [vmem:[#allocation2 + $0x28] sm:$0xff] %v281
  %298 = vst [vmem:[#allocation2 + $0x30] sm:$0xff] %v282
  %299 = vst [vmem:[#allocation2 + $0x38] sm:$0xff] %v283
  %300 = vst [vmem:[#allocation2 + $0x40] sm:$0xff] %v284
  %301 = vst [vmem:[#allocation2 + $0x48] sm:$0xff] %v285
  %302 = vst [vmem:[#allocation2 + $0x50] sm:$0xff] %v286
  %303 = vst [vmem:[#allocation2 + $0x58] sm:$0xff] %v287
  %304 = vst [vmem:[#allocation2 + $0x60] sm:$0xff] %v288
  %305 = vst [vmem:[#allocation2 + $0x68] sm:$0xff] %v289
  %306 = vst [vmem:[#allocation2 + $0x70] sm:$0xff] %v290
  %307 = vst [vmem:[#allocation2 + $0x78] sm:$0xff] %v291
  // Predicated region
  $region18: #{decoder_block_forward.7} parent=0 // pred_check
    %p308 = pneg %p15
  $region19: #{decoder_block_forward.7} parent=0 // pred_check_branch
    %310 = sbr.rel (%p308) target = $region21
  $region20: #{decoder_block_forward.7} parent=0 // pred_region
    %v311 = vld [vmem:[#allocation2] sm:$0xff]
    %v312 = vld [vmem:[#allocation2 + $0x8] sm:$0xff]
    %v313 = vld [vmem:[#allocation2 + $0x10] sm:$0xff]
    %v314 = vld [vmem:[#allocation2 + $0x18] sm:$0xff]
    %v315 = vld [vmem:[#allocation2 + $0x20] sm:$0xff]
    %v316 = vld [vmem:[#allocation2 + $0x28] sm:$0xff]
    %v317 = vld [vmem:[#allocation2 + $0x30] sm:$0xff]
    %v318 = vld [vmem:[#allocation2 + $0x38] sm:$0xff]
    %v319 = vld [vmem:[#allocation2 + $0x40] sm:$0xff]
    %v320 = vld [vmem:[#allocation2 + $0x48] sm:$0xff]
    %v321 = vld [vmem:[#allocation2 + $0x50] sm:$0xff]
    %v322 = vld [vmem:[#allocation2 + $0x58] sm:$0xff]
    %v323 = vld [vmem:[#allocation2 + $0x60] sm:$0xff]
    %v324 = vld [vmem:[#allocation2 + $0x68] sm:$0xff]
    %v325 = vld [vmem:[#allocation2 + $0x70] sm:$0xff]
    %v326 = vld [vmem:[#allocation2 + $0x78] sm:$0xff]
    %v327 = vld [vmem:[%s2] sm:$0x1]
    %v329 = vlaneseq
    %v330 = vshrl.u32 %v329, 7
    %v331 = vsub.s32 0, %v330
    %v332 = vrot.slane %v327, %v331
    %v334 = vadd.f32 %v311, %v332
    %v335 = vadd.f32 %v312, %v332
    %v336 = vadd.f32 %v313, %v332
    %v337 = vadd.f32 %v314, %v332
    %v338 = vadd.f32 %v315, %v332
    %v339 = vadd.f32 %v316, %v332
    %v340 = vadd.f32 %v317, %v332
    %v341 = vadd.f32 %v318, %v332
    %v342 = vadd.f32 %v319, %v332
    %v343 = vadd.f32 %v320, %v332
    %v344 = vadd.f32 %v321, %v332
    %v345 = vadd.f32 %v322, %v332
    %v346 = vadd.f32 %v323, %v332
    %v347 = vadd.f32 %v324, %v332
    %v348 = vadd.f32 %v325, %v332
    %v349 = vadd.f32 %v326, %v332
    %v350 = vmax.f32 %v334, 0.0
    %v351 = vmax.f32 %v335, 0.0
    %v352 = vmax.f32 %v336, 0.0
    %v353 = vmax.f32 %v337, 0.0
    %v354 = vmax.f32 %v338, 0.0
    %v355 = vmax.f32 %v339, 0.0
    %v356 = vmax.f32 %v340, 0.0
    %v357 = vmax.f32 %v341, 0.0
    %v358 = vmax.f32 %v342, 0.0
    %v359 = vmax.f32 %v343, 0.0
    %v360 = vmax.f32 %v344, 0.0
    %v361 = vmax.f32 %v345, 0.0
    %v362 = vmax.f32 %v346, 0.0
    %v363 = vmax.f32 %v347, 0.0
    %v364 = vmax.f32 %v348, 0.0
    %v365 = vmax.f32 %v349, 0.0
    %v366 = vpack.c.bf16 %v351, %v350
    %v367 = vpack.c.bf16 %v353, %v352
    %v368 = vpack.c.bf16 %v355, %v354
    %v369 = vpack.c.bf16 %v357, %v356
    %v370 = vpack.c.bf16 %v359, %v358
    %v371 = vpack.c.bf16 %v361, %v360
    %v372 = vpack.c.bf16 %v363, %v362
    %v373 = vpack.c.bf16 %v365, %v364
    %v382 = vunpack.c.l.b16 %v366
    %v383 = vunpack.c.h.b16 %v366
    %v384 = vunpack.c.l.b16 %v367
    %v385 = vunpack.c.h.b16 %v367
    %v386 = vunpack.c.l.b16 %v368
    %v387 = vunpack.c.h.b16 %v368
    %v388 = vunpack.c.l.b16 %v369
    %v389 = vunpack.c.h.b16 %v369
    %v390 = vunpack.c.l.b16 %v370
    %v391 = vunpack.c.h.b16 %v370
    %v392 = vunpack.c.l.b16 %v371
    %v393 = vunpack.c.h.b16 %v371
    %v394 = vunpack.c.l.b16 %v372
    %v395 = vunpack.c.h.b16 %v372
    %v396 = vunpack.c.l.b16 %v373
    %v397 = vunpack.c.h.b16 %v373
    %v398 = vpack.c.b16 %v382, %v382
    %v399 = vpack.c.b16 %v383, %v383
    %v400 = vpack.c.b16 %v384, %v384
    %v401 = vpack.c.b16 %v385, %v385
    %v402 = vpack.c.b16 %v386, %v386
    %v403 = vpack.c.b16 %v387, %v387
    %v404 = vpack.c.b16 %v388, %v388
    %v405 = vpack.c.b16 %v389, %v389
    %v406 = vpack.c.b16 %v390, %v390
    %v407 = vpack.c.b16 %v391, %v391
    %v408 = vpack.c.b16 %v392, %v392
    %v409 = vpack.c.b16 %v393, %v393
    %v410 = vpack.c.b16 %v394, %v394
    %v411 = vpack.c.b16 %v395, %v395
    %v412 = vpack.c.b16 %v396, %v396
    %v413 = vpack.c.b16 %v397, %v397
    %430 = vst [vmem:[%s3] sm:$0xf] %v398
    %431 = vst [vmem:[%s3 + $0x4] sm:$0xf] %v399
    %432 = vst [vmem:[%s3 + $0x8] sm:$0xf] %v400
    %433 = vst [vmem:[%s3 + $0xc] sm:$0xf] %v401
    %434 = vst [vmem:[%s3 + $0x10] sm:$0xf] %v402
    %435 = vst [vmem:[%s3 + $0x14] sm:$0xf] %v403
    %436 = vst [vmem:[%s3 + $0x18] sm:$0xf] %v404
    %437 = vst [vmem:[%s3 + $0x1c] sm:$0xf] %v405
    %438 = vst [vmem:[%s3 + $0x20] sm:$0xf] %v406
    %439 = vst [vmem:[%s3 + $0x24] sm:$0xf] %v407
    %440 = vst [vmem:[%s3 + $0x28] sm:$0xf] %v408
    %441 = vst [vmem:[%s3 + $0x2c] sm:$0xf] %v409
    %442 = vst [vmem:[%s3 + $0x30] sm:$0xf] %v410
    %443 = vst [vmem:[%s3 + $0x34] sm:$0xf] %v411
    %444 = vst [vmem:[%s3 + $0x38] sm:$0xf] %v412
    %445 = vst [vmem:[%s3 + $0x3c] sm:$0xf] %v413
  $region21: #{decoder_block_forward.7} parent=0 // pred_fallthru
    _
  // Predicated region
  $region22: #{decoder_block_forward.7} parent=0 // pred_check
    _
  $region23: #{decoder_block_forward.7} parent=0 // pred_check_branch
    %447 = sbr.rel (0) target = $region25
  $region24: #{decoder_block_forward.7} parent=0 // pred_region
    _
  $region25: #{decoder_block_forward.7} parent=0 // pred_fallthru
    _
  // Predicated region
  $region26: #{decoder_block_forward.7} parent=0 // pred_check
    _
  $region27: #{decoder_block_forward.7} parent=0 // pred_check_branch
    %449 = sbr.rel (0) target = $region29
  $region28: #{decoder_block_forward.7} parent=0 // pred_region
    _
  $region29: #{decoder_block_forward.7} parent=0 // pred_fallthru
    _

// kernel: decoder_block_forward.12
$region0: #{decoder_block_forward.12}
  #allocation0 [shape = 'u32[]', space=smem, size = 0x4, offset = 0x4, fixed_abs, tag = 'smem constant byte address 0x4 - core index']
  #allocation1 [shape = 'u32[144,128]{1,0:T(1,128)}', space=vmem, size = 0x12000, scoped, tag = 'internal scratch']
  #allocation2 [shape = 'f32[128,128]{1,0:T(8,128)}', space=vmem, size = 0x10000, scoped, tag = 'scratch operand']
  %s0 = inlined_call_operand.vmem [shape: bf16[128,128], index: 0, kind: input, shape index: {}]
  %s1 = inlined_call_operand.vmem [shape: bf16[128,128], index: 1, kind: input, shape index: {}]
  %s2 = inlined_call_operand.vmem [shape: f32[1,128], index: 2, kind: input, shape index: {}]
  %s3 = inlined_call_operand.vmem [shape: bf16[128,128], index: 3, kind: output, shape index: {}]
  %s4 = sld [smem:[#allocation0]]
  $region30: #{decoder_block_forward.12} parent=0
    _
  %s6 = ssub.s32 1, %s4
  %s7 = scalar_select 0, %s6, %s4
  // Predicated region
  $region2: #{decoder_block_forward.12} parent=0 // pred_check
    _
  $region3: #{decoder_block_forward.12} parent=0 // pred_check_branch
    %9 = sbr.rel (0) target = $region5
  $region4: #{decoder_block_forward.12} parent=0 // pred_region
    _
  $region5: #{decoder_block_forward.12} parent=0 // pred_fallthru
    _
  // Predicated region
  $region6: #{decoder_block_forward.12} parent=0 // pred_check
    _
  $region7: #{decoder_block_forward.12} parent=0 // pred_check_branch
    %11 = sbr.rel (0) target = $region9
  $region8: #{decoder_block_forward.12} parent=0 // pred_region
    _
  $region9: #{decoder_block_forward.12} parent=0 // pred_fallthru
    _
  // Predicated region
  $region10: #{decoder_block_forward.12} parent=0 // pred_check
    _
  $region11: #{decoder_block_forward.12} parent=0 // pred_check_branch
    %13 = sbr.rel (0) target = $region13
  $region12: #{decoder_block_forward.12} parent=0 // pred_region
    _
  $region13: #{decoder_block_forward.12} parent=0 // pred_fallthru
    _
  %p15 = scmp.eq.s32.totalorder 0, 0
  // Predicated region
  $region14: #{decoder_block_forward.12} parent=0 // pred_check
    %p16 = pneg %p15
  $region15: #{decoder_block_forward.12} parent=0 // pred_check_branch
    %18 = sbr.rel (%p16) target = $region17
  $region16: #{decoder_block_forward.12} parent=0 // pred_region
    %19 = vst [vmem:[#allocation2] sm:$0xff] 0.0
    %20 = vst [vmem:[#allocation2 + $0x8] sm:$0xff] 0.0
    %21 = vst [vmem:[#allocation2 + $0x10] sm:$0xff] 0.0
    %22 = vst [vmem:[#allocation2 + $0x18] sm:$0xff] 0.0
    %23 = vst [vmem:[#allocation2 + $0x20] sm:$0xff] 0.0
    %24 = vst [vmem:[#allocation2 + $0x28] sm:$0xff] 0.0
    %25 = vst [vmem:[#allocation2 + $0x30] sm:$0xff] 0.0
    %26 = vst [vmem:[#allocation2 + $0x38] sm:$0xff] 0.0
    %27 = vst [vmem:[#allocation2 + $0x40] sm:$0xff] 0.0
    %28 = vst [vmem:[#allocation2 + $0x48] sm:$0xff] 0.0
    %29 = vst [vmem:[#allocation2 + $0x50] sm:$0xff] 0.0
    %30 = vst [vmem:[#allocation2 + $0x58] sm:$0xff] 0.0
    %31 = vst [vmem:[#allocation2 + $0x60] sm:$0xff] 0.0
    %32 = vst [vmem:[#allocation2 + $0x68] sm:$0xff] 0.0
    %33 = vst [vmem:[#allocation2 + $0x70] sm:$0xff] 0.0
    %34 = vst [vmem:[#allocation2 + $0x78] sm:$0xff] 0.0
  $region17: #{decoder_block_forward.12} parent=0 // pred_fallthru
    _
  %v35 = vld [vmem:[#allocation2] sm:$0xff]
  %v36 = vld [vmem:[#allocation2 + $0x8] sm:$0xff]
  %v37 = vld [vmem:[#allocation2 + $0x10] sm:$0xff]
  %v38 = vld [vmem:[#allocation2 + $0x18] sm:$0xff]
  %v39 = vld [vmem:[#allocation2 + $0x20] sm:$0xff]
  %v40 = vld [vmem:[#allocation2 + $0x28] sm:$0xff]
  %v41 = vld [vmem:[#allocation2 + $0x30] sm:$0xff]
  %v42 = vld [vmem:[#allocation2 + $0x38] sm:$0xff]
  %v43 = vld [vmem:[#allocation2 + $0x40] sm:$0xff]
  %v44 = vld [vmem:[#allocation2 + $0x48] sm:$0xff]
  %v45 = vld [vmem:[#allocation2 + $0x50] sm:$0xff]
  %v46 = vld [vmem:[#allocation2 + $0x58] sm:$0xff]
  %v47 = vld [vmem:[#allocation2 + $0x60] sm:$0xff]
  %v48 = vld [vmem:[#allocation2 + $0x68] sm:$0xff]
  %v49 = vld [vmem:[#allocation2 + $0x70] sm:$0xff]
  %v50 = vld [vmem:[#allocation2 + $0x78] sm:$0xff]
  %v51 = vld [vmem:[%s0] sm:$0xf]
  %v52 = vld [vmem:[%s0 + $0x4] sm:$0xf]
  %v53 = vld [vmem:[%s0 + $0x8] sm:$0xf]
  %v54 = vld [vmem:[%s0 + $0xc] sm:$0xf]
  %v55 = vld [vmem:[%s0 + $0x10] sm:$0xf]
  %v56 = vld [vmem:[%s0 + $0x14] sm:$0xf]
  %v57 = vld [vmem:[%s0 + $0x18] sm:$0xf]
  %v58 = vld [vmem:[%s0 + $0x1c] sm:$0xf]
  %v59 = vld [vmem:[%s0 + $0x20] sm:$0xf]
  %v60 = vld [vmem:[%s0 + $0x24] sm:$0xf]
  %v61 = vld [vmem:[%s0 + $0x28] sm:$0xf]
  %v62 = vld [vmem:[%s0 + $0x2c] sm:$0xf]
  %v63 = vld [vmem:[%s0 + $0x30] sm:$0xf]
  %v64 = vld [vmem:[%s0 + $0x34] sm:$0xf]
  %v65 = vld [vmem:[%s0 + $0x38] sm:$0xf]
  %v66 = vld [vmem:[%s0 + $0x3c] sm:$0xf]
  %v67 = vld [vmem:[%s1] sm:$0xf]
  %v68 = vld [vmem:[%s1 + $0x4] sm:$0xf]
  %v69 = vld [vmem:[%s1 + $0x8] sm:$0xf]
  %v70 = vld [vmem:[%s1 + $0xc] sm:$0xf]
  %v71 = vld [vmem:[%s1 + $0x10] sm:$0xf]
  %v72 = vld [vmem:[%s1 + $0x14] sm:$0xf]
  %v73 = vld [vmem:[%s1 + $0x18] sm:$0xf]
  %v74 = vld [vmem:[%s1 + $0x1c] sm:$0xf]
  %v75 = vld [vmem:[%s1 + $0x20] sm:$0xf]
  %v76 = vld [vmem:[%s1 + $0x24] sm:$0xf]
  %v77 = vld [vmem:[%s1 + $0x28] sm:$0xf]
  %v78 = vld [vmem:[%s1 + $0x2c] sm:$0xf]
  %v79 = vld [vmem:[%s1 + $0x30] sm:$0xf]
  %v80 = vld [vmem:[%s1 + $0x34] sm:$0xf]
  %v81 = vld [vmem:[%s1 + $0x38] sm:$0xf]
  %v82 = vld [vmem:[%s1 + $0x3c] sm:$0xf]
  %v99 = vunpack.c.l.b16 %v51
  %v100 = vunpack.c.l.b16 %v52
  %v101 = vunpack.c.l.b16 %v53
  %v102 = vunpack.c.l.b16 %v54
  %v103 = vunpack.c.l.b16 %v55
  %v104 = vunpack.c.l.b16 %v56
  %v105 = vunpack.c.l.b16 %v57
  %v106 = vunpack.c.l.b16 %v58
  %v107 = vunpack.c.l.b16 %v59
  %v108 = vunpack.c.l.b16 %v60
  %v109 = vunpack.c.l.b16 %v61
  %v110 = vunpack.c.l.b16 %v62
  %v111 = vunpack.c.l.b16 %v63
  %v112 = vunpack.c.l.b16 %v64
  %v113 = vunpack.c.l.b16 %v65
  %v114 = vunpack.c.l.b16 %v66
  %v115 = vpack.c.b16 %v100, %v99
  %v116 = vpack.c.b16 %v102, %v101
  %v117 = vpack.c.b16 %v104, %v103
  %v118 = vpack.c.b16 %v106, %v105
  %v119 = vpack.c.b16 %v108, %v107
  %v120 = vpack.c.b16 %v110, %v109
  %v121 = vpack.c.b16 %v112, %v111
  %v122 = vpack.c.b16 %v114, %v113
  %v147 = vunpack.c.l.b16 %v67
  %v148 = vunpack.c.l.b16 %v68
  %v149 = vunpack.c.l.b16 %v69
  %v150 = vunpack.c.l.b16 %v70
  %v151 = vunpack.c.l.b16 %v71
  %v152 = vunpack.c.l.b16 %v72
  %v153 = vunpack.c.l.b16 %v73
  %v154 = vunpack.c.l.b16 %v74
  %v155 = vunpack.c.l.b16 %v75
  %v156 = vunpack.c.l.b16 %v76
  %v157 = vunpack.c.l.b16 %v77
  %v158 = vunpack.c.l.b16 %v78
  %v159 = vunpack.c.l.b16 %v79
  %v160 = vunpack.c.l.b16 %v80
  %v161 = vunpack.c.l.b16 %v81
  %v162 = vunpack.c.l.b16 %v82
  %v163 = vpack.c.b16 %v148, %v147
  %v164 = vpack.c.b16 %v150, %v149
  %v165 = vpack.c.b16 %v152, %v151
  %v166 = vpack.c.b16 %v154, %v153
  %v167 = vpack.c.b16 %v156, %v155
  %v168 = vpack.c.b16 %v158, %v157
  %v169 = vpack.c.b16 %v160, %v159
  %v170 = vpack.c.b16 %v162, %v161
  %179 = vmatprep.subr.bf16.mxu0 0
  %180 = vmatpush1.bf16.msra.mxu0 %v163
  %181 = vmatprep.subr.bf16.mxu0 0
  %182 = vmatpush1.bf16.msra.mxu0 %v164
  %183 = vmatprep.subr.bf16.mxu0 0
  %184 = vmatpush1.bf16.msra.mxu0 %v165
  %185 = vmatprep.subr.bf16.mxu0 0
  %186 = vmatpush1.bf16.msra.mxu0 %v166
  %187 = vmatprep.subr.bf16.mxu0 0
  %188 = vmatpush1.bf16.msra.mxu0 %v167
  %189 = vmatprep.subr.bf16.mxu0 0
  %190 = vmatpush1.bf16.msra.mxu0 %v168
  %191 = vmatprep.subr.bf16.mxu0 0
  %192 = vmatpush1.bf16.msra.mxu0 %v169
  %193 = vmatprep.subr.bf16.mxu0 0
  %194 = vmatpush1.bf16.msra.mxu0 %v170
  %195 = vmatprep.subr.bf16.mxu0 0
  %196 = vmatpush1.bf16.msra.mxu0 0
  %197 = vmatprep.subr.bf16.mxu0 0
  %198 = vmatpush1.bf16.msra.mxu0 0
  %199 = vmatprep.subr.bf16.mxu0 0
  %200 = vmatpush1.bf16.msra.mxu0 0
  %201 = vmatprep.subr.bf16.mxu0 0
  %202 = vmatpush1.bf16.msra.mxu0 0
  %203 = vmatprep.subr.bf16.mxu0 0
  %204 = vmatpush1.bf16.msra.mxu0 0
  %205 = vmatprep.subr.bf16.mxu0 0
  %206 = vmatpush1.bf16.msra.mxu0 0
  %207 = vmatprep.subr.bf16.mxu0 0
  %208 = vmatpush1.bf16.msra.mxu0 0
  %209 = vmatprep.subr.bf16.mxu0 0
  %210 = vmatpush1.bf16.msra.mxu0 0
  %211 = vmatprep.mubr.bf16.mxu0 0
  %212 = vmatmul.mubr.bf16.gmra.mrb[0].mxu0 %v115
  %v213 = vpop.f32.mrb[0].mxu0
  %v214 = vadd.f32 0.0, %v213
  %v215 = vpop.f32.mrb[0].mxu0
  %v216 = vpop.f32.mrb[0].mxu0
  %v217 = vadd.f32 0.0, %v216
  %v218 = vpop.f32.mrb[0].mxu0
  %219 = vmatprep.mubr.bf16.mxu0 0
  %220 = vmatmul.mubr.bf16.gmra.mrb[0].mxu0 %v116
  %v221 = vpop.f32.mrb[0].mxu0
  %v222 = vadd.f32 0.0, %v221
  %v223 = vpop.f32.mrb[0].mxu0
  %v224 = vpop.f32.mrb[0].mxu0
  %v225 = vadd.f32 0.0, %v224
  %v226 = vpop.f32.mrb[0].mxu0
  %227 = vmatprep.mubr.bf16.mxu0 0
  %228 = vmatmul.mubr.bf16.gmra.mrb[0].mxu0 %v117
  %v229 = vpop.f32.mrb[0].mxu0
  %v230 = vadd.f32 0.0, %v229
  %v231 = vpop.f32.mrb[0].mxu0
  %v232 = vpop.f32.mrb[0].mxu0
  %v233 = vadd.f32 0.0, %v232
  %v234 = vpop.f32.mrb[0].mxu0
  %235 = vmatprep.mubr.bf16.mxu0 0
  %236 = vmatmul.mubr.bf16.gmra.mrb[0].mxu0 %v118
  %v237 = vpop.f32.mrb[0].mxu0
  %v238 = vadd.f32 0.0, %v237
  %v239 = vpop.f32.mrb[0].mxu0
  %v240 = vpop.f32.mrb[0].mxu0
  %v241 = vadd.f32 0.0, %v240
  %v242 = vpop.f32.mrb[0].mxu0
  %243 = vmatprep.mubr.bf16.mxu0 0
  %244 = vmatmul.mubr.bf16.gmra.mrb[0].mxu0 %v119
  %v245 = vpop.f32.mrb[0].mxu0
  %v246 = vadd.f32 0.0, %v245
  %v247 = vpop.f32.mrb[0].mxu0
  %v248 = vpop.f32.mrb[0].mxu0
  %v249 = vadd.f32 0.0, %v248
  %v250 = vpop.f32.mrb[0].mxu0
  %251 = vmatprep.mubr.bf16.mxu0 0
  %252 = vmatmul.mubr.bf16.gmra.mrb[0].mxu0 %v120
  %v253 = vpop.f32.mrb[0].mxu0
  %v254 = vadd.f32 0.0, %v253
  %v255 = vpop.f32.mrb[0].mxu0
  %v256 = vpop.f32.mrb[0].mxu0
  %v257 = vadd.f32 0.0, %v256
  %v258 = vpop.f32.mrb[0].mxu0
  %259 = vmatprep.mubr.bf16.mxu0 0
  %260 = vmatmul.mubr.bf16.gmra.mrb[0].mxu0 %v121
  %v261 = vpop.f32.mrb[0].mxu0
  %v262 = vadd.f32 0.0, %v261
  %v263 = vpop.f32.mrb[0].mxu0
  %v264 = vpop.f32.mrb[0].mxu0
  %v265 = vadd.f32 0.0, %v264
  %v266 = vpop.f32.mrb[0].mxu0
  %267 = vmatprep.mubr.bf16.mxu0 0
  %268 = vmatmul.mubr.bf16.gmra.mrb[0].mxu0 %v122
  %v269 = vpop.f32.mrb[0].mxu0
  %v270 = vadd.f32 0.0, %v269
  %v271 = vpop.f32.mrb[0].mxu0
  %v272 = vpop.f32.mrb[0].mxu0
  %v273 = vadd.f32 0.0, %v272
  %v274 = vpop.f32.mrb[0].mxu0
  %275 = vdwg.mxu0
  %v276 = vadd.f32 %v35, %v214
  %v277 = vadd.f32 %v36, %v217
  %v278 = vadd.f32 %v37, %v222
  %v279 = vadd.f32 %v38, %v225
  %v280 = vadd.f32 %v39, %v230
  %v281 = vadd.f32 %v40, %v233
  %v282 = vadd.f32 %v41, %v238
  %v283 = vadd.f32 %v42, %v241
  %v284 = vadd.f32 %v43, %v246
  %v285 = vadd.f32 %v44, %v249
  %v286 = vadd.f32 %v45, %v254
  %v287 = vadd.f32 %v46, %v257
  %v288 = vadd.f32 %v47, %v262
  %v289 = vadd.f32 %v48, %v265
  %v290 = vadd.f32 %v49, %v270
  %v291 = vadd.f32 %v50, %v273
  %292 = vst [vmem:[#allocation2] sm:$0xff] %v276
  %293 = vst [vmem:[#allocation2 + $0x8] sm:$0xff] %v277
  %294 = vst [vmem:[#allocation2 + $0x10] sm:$0xff] %v278
  %295 = vst [vmem:[#allocation2 + $0x18] sm:$0xff] %v279
  %296 = vst [vmem:[#allocation2 + $0x20] sm:$0xff] %v280
  %297 = vst [vmem:[#allocation2 + $0x28] sm:$0xff] %v281
  %298 = vst [vmem:[#allocation2 + $0x30] sm:$0xff] %v282
  %299 = vst [vmem:[#allocation2 + $0x38] sm:$0xff] %v283
  %300 = vst [vmem:[#allocation2 + $0x40] sm:$0xff] %v284
  %301 = vst [vmem:[#allocation2 + $0x48] sm:$0xff] %v285
  %302 = vst [vmem:[#allocation2 + $0x50] sm:$0xff] %v286
  %303 = vst [vmem:[#allocation2 + $0x58] sm:$0xff] %v287
  %304 = vst [vmem:[#allocation2 + $0x60] sm:$0xff] %v288
  %305 = vst [vmem:[#allocation2 + $0x68] sm:$0xff] %v289
  %306 = vst [vmem:[#allocation2 + $0x70] sm:$0xff] %v290
  %307 = vst [vmem:[#allocation2 + $0x78] sm:$0xff] %v291
  // Predicated region
  $region18: #{decoder_block_forward.12} parent=0 // pred_check
    %p308 = pneg %p15
  $region19: #{decoder_block_forward.12} parent=0 // pred_check_branch
    %310 = sbr.rel (%p308) target = $region21
  $region20: #{decoder_block_forward.12} parent=0 // pred_region
    %v311 = vld [vmem:[#allocation2] sm:$0xff]
    %v312 = vld [vmem:[#allocation2 + $0x8] sm:$0xff]
    %v313 = vld [vmem:[#allocation2 + $0x10] sm:$0xff]
    %v314 = vld [vmem:[#allocation2 + $0x18] sm:$0xff]
    %v315 = vld [vmem:[#allocation2 + $0x20] sm:$0xff]
    %v316 = vld [vmem:[#allocation2 + $0x28] sm:$0xff]
    %v317 = vld [vmem:[#allocation2 + $0x30] sm:$0xff]
    %v318 = vld [vmem:[#allocation2 + $0x38] sm:$0xff]
    %v319 = vld [vmem:[#allocation2 + $0x40] sm:$0xff]
    %v320 = vld [vmem:[#allocation2 + $0x48] sm:$0xff]
    %v321 = vld [vmem:[#allocation2 + $0x50] sm:$0xff]
    %v322 = vld [vmem:[#allocation2 + $0x58] sm:$0xff]
    %v323 = vld [vmem:[#allocation2 + $0x60] sm:$0xff]
    %v324 = vld [vmem:[#allocation2 + $0x68] sm:$0xff]
    %v325 = vld [vmem:[#allocation2 + $0x70] sm:$0xff]
    %v326 = vld [vmem:[#allocation2 + $0x78] sm:$0xff]
    %v327 = vld [vmem:[%s2] sm:$0x1]
    %v329 = vlaneseq
    %v330 = vshrl.u32 %v329, 7
    %v331 = vsub.s32 0, %v330
    %v332 = vrot.slane %v327, %v331
    %v334 = vadd.f32 %v311, %v332
    %v335 = vadd.f32 %v312, %v332
    %v336 = vadd.f32 %v313, %v332
    %v337 = vadd.f32 %v314, %v332
    %v338 = vadd.f32 %v315, %v332
    %v339 = vadd.f32 %v316, %v332
    %v340 = vadd.f32 %v317, %v332
    %v341 = vadd.f32 %v318, %v332
    %v342 = vadd.f32 %v319, %v332
    %v343 = vadd.f32 %v320, %v332
    %v344 = vadd.f32 %v321, %v332
    %v345 = vadd.f32 %v322, %v332
    %v346 = vadd.f32 %v323, %v332
    %v347 = vadd.f32 %v324, %v332
    %v348 = vadd.f32 %v325, %v332
    %v349 = vadd.f32 %v326, %v332
    %v350 = vpack.c.bf16 %v335, %v334
    %v351 = vpack.c.bf16 %v337, %v336
    %v352 = vpack.c.bf16 %v339, %v338
    %v353 = vpack.c.bf16 %v341, %v340
    %v354 = vpack.c.bf16 %v343, %v342
    %v355 = vpack.c.bf16 %v345, %v344
    %v356 = vpack.c.bf16 %v347, %v346
    %v357 = vpack.c.bf16 %v349, %v348
    %v366 = vunpack.c.l.b16 %v350
    %v367 = vunpack.c.h.b16 %v350
    %v368 = vunpack.c.l.b16 %v351
    %v369 = vunpack.c.h.b16 %v351
    %v370 = vunpack.c.l.b16 %v352
    %v371 = vunpack.c.h.b16 %v352
    %v372 = vunpack.c.l.b16 %v353
    %v373 = vunpack.c.h.b16 %v353
    %v374 = vunpack.c.l.b16 %v354
    %v375 = vunpack.c.h.b16 %v354
    %v376 = vunpack.c.l.b16 %v355
    %v377 = vunpack.c.h.b16 %v355
    %v378 = vunpack.c.l.b16 %v356
    %v379 = vunpack.c.h.b16 %v356
    %v380 = vunpack.c.l.b16 %v357
    %v381 = vunpack.c.h.b16 %v357
    %v382 = vpack.c.b16 %v366, %v366
    %v383 = vpack.c.b16 %v367, %v367
    %v384 = vpack.c.b16 %v368, %v368
    %v385 = vpack.c.b16 %v369, %v369
    %v386 = vpack.c.b16 %v370, %v370
    %v387 = vpack.c.b16 %v371, %v371
    %v388 = vpack.c.b16 %v372, %v372
    %v389 = vpack.c.b16 %v373, %v373
    %v390 = vpack.c.b16 %v374, %v374
    %v391 = vpack.c.b16 %v375, %v375
    %v392 = vpack.c.b16 %v376, %v376
    %v393 = vpack.c.b16 %v377, %v377
    %v394 = vpack.c.b16 %v378, %v378
    %v395 = vpack.c.b16 %v379, %v379
    %v396 = vpack.c.b16 %v380, %v380
    %v397 = vpack.c.b16 %v381, %v381
    %414 = vst [vmem:[%s3] sm:$0xf] %v382
    %415 = vst [vmem:[%s3 + $0x4] sm:$0xf] %v383
    %416 = vst [vmem:[%s3 + $0x8] sm:$0xf] %v384
    %417 = vst [vmem:[%s3 + $0xc] sm:$0xf] %v385
    %418 = vst [vmem:[%s3 + $0x10] sm:$0xf] %v386
    %419 = vst [vmem:[%s3 + $0x14] sm:$0xf] %v387
    %420 = vst [vmem:[%s3 + $0x18] sm:$0xf] %v388
    %421 = vst [vmem:[%s3 + $0x1c] sm:$0xf] %v389
    %422 = vst [vmem:[%s3 + $0x20] sm:$0xf] %v390
    %423 = vst [vmem:[%s3 + $0x24] sm:$0xf] %v391
    %424 = vst [vmem:[%s3 + $0x28] sm:$0xf] %v392
    %425 = vst [vmem:[%s3 + $0x2c] sm:$0xf] %v393
    %426 = vst [vmem:[%s3 + $0x30] sm:$0xf] %v394
    %427 = vst [vmem:[%s3 + $0x34] sm:$0xf] %v395
    %428 = vst [vmem:[%s3 + $0x38] sm:$0xf] %v396
    %429 = vst [vmem:[%s3 + $0x3c] sm:$0xf] %v397
  $region21: #{decoder_block_forward.12} parent=0 // pred_fallthru
    _
  // Predicated region
  $region22: #{decoder_block_forward.12} parent=0 // pred_check
    _
  $region23: #{decoder_block_forward.12} parent=0 // pred_check_branch
    %431 = sbr.rel (0) target = $region25
  $region24: #{decoder_block_forward.12} parent=0 // pred_region
    _
  $region25: #{decoder_block_forward.12} parent=0 // pred_fallthru
    _
  // Predicated region
  $region26: #{decoder_block_forward.12} parent=0 // pred_check
    _
  $region27: #{decoder_block_forward.12} parent=0 // pred_check_branch
    %433 = sbr.rel (0) target = $region29
  $region28: #{decoder_block_forward.12} parent=0 // pred_region
    _
  $region29: #{decoder_block_forward.12} parent=0 // pred_fallthru
    _

// kernel: decoder_block_forward.11
$region0: #{decoder_block_forward.11}
  #allocation0 [shape = 'u32[]', space=smem, size = 0x4, offset = 0x4, fixed_abs, tag = 'smem constant byte address 0x4 - core index']
  #allocation1 [shape = 'u32[144,128]{1,0:T(1,128)}', space=vmem, size = 0x12000, scoped, tag = 'internal scratch']
  #allocation2 [shape = 'f32[128,128]{1,0:T(8,128)}', space=vmem, size = 0x10000, scoped, tag = 'scratch operand']
  %s0 = inlined_call_operand.vmem [shape: bf16[128,256], index: 0, kind: input, shape index: {}]
  %s1 = inlined_call_operand.vmem [shape: bf16[256,128], index: 1, kind: input, shape index: {}]
  %s2 = inlined_call_operand.vmem [shape: f32[1,128], index: 2, kind: input, shape index: {}]
  %s3 = inlined_call_operand.vmem [shape: bf16[128,128], index: 3, kind: output, shape index: {}]
  %s4 = sld [smem:[#allocation0]]
  $region30: #{decoder_block_forward.11} parent=0
    _
  %s6 = ssub.s32 1, %s4
  %s7 = scalar_select 0, %s6, %s4
  // Predicated region
  $region2: #{decoder_block_forward.11} parent=0 // pred_check
    _
  $region3: #{decoder_block_forward.11} parent=0 // pred_check_branch
    %9 = sbr.rel (0) target = $region5
  $region4: #{decoder_block_forward.11} parent=0 // pred_region
    _
  $region5: #{decoder_block_forward.11} parent=0 // pred_fallthru
    _
  // Predicated region
  $region6: #{decoder_block_forward.11} parent=0 // pred_check
    _
  $region7: #{decoder_block_forward.11} parent=0 // pred_check_branch
    %11 = sbr.rel (0) target = $region9
  $region8: #{decoder_block_forward.11} parent=0 // pred_region
    _
  $region9: #{decoder_block_forward.11} parent=0 // pred_fallthru
    _
  // Predicated region
  $region10: #{decoder_block_forward.11} parent=0 // pred_check
    _
  $region11: #{decoder_block_forward.11} parent=0 // pred_check_branch
    %13 = sbr.rel (0) target = $region13
  $region12: #{decoder_block_forward.11} parent=0 // pred_region
    _
  $region13: #{decoder_block_forward.11} parent=0 // pred_fallthru
    _
  %p15 = scmp.eq.s32.totalorder 0, 0
  // Predicated region
  $region14: #{decoder_block_forward.11} parent=0 // pred_check
    %p16 = pneg %p15
  $region15: #{decoder_block_forward.11} parent=0 // pred_check_branch
    %18 = sbr.rel (%p16) target = $region17
  $region16: #{decoder_block_forward.11} parent=0 // pred_region
    %19 = vst [vmem:[#allocation2] sm:$0xff] 0.0
    %20 = vst [vmem:[#allocation2 + $0x8] sm:$0xff] 0.0
    %21 = vst [vmem:[#allocation2 + $0x10] sm:$0xff] 0.0
    %22 = vst [vmem:[#allocation2 + $0x18] sm:$0xff] 0.0
    %23 = vst [vmem:[#allocation2 + $0x20] sm:$0xff] 0.0
    %24 = vst [vmem:[#allocation2 + $0x28] sm:$0xff] 0.0
    %25 = vst [vmem:[#allocation2 + $0x30] sm:$0xff] 0.0
    %26 = vst [vmem:[#allocation2 + $0x38] sm:$0xff] 0.0
    %27 = vst [vmem:[#allocation2 + $0x40] sm:$0xff] 0.0
    %28 = vst [vmem:[#allocation2 + $0x48] sm:$0xff] 0.0
    %29 = vst [vmem:[#allocation2 + $0x50] sm:$0xff] 0.0
    %30 = vst [vmem:[#allocation2 + $0x58] sm:$0xff] 0.0
    %31 = vst [vmem:[#allocation2 + $0x60] sm:$0xff] 0.0
    %32 = vst [vmem:[#allocation2 + $0x68] sm:$0xff] 0.0
    %33 = vst [vmem:[#allocation2 + $0x70] sm:$0xff] 0.0
    %34 = vst [vmem:[#allocation2 + $0x78] sm:$0xff] 0.0
  $region17: #{decoder_block_forward.11} parent=0 // pred_fallthru
    _
  %v35 = vld [vmem:[#allocation2] sm:$0xff]
  %v36 = vld [vmem:[#allocation2 + $0x8] sm:$0xff]
  %v37 = vld [vmem:[#allocation2 + $0x10] sm:$0xff]
  %v38 = vld [vmem:[#allocation2 + $0x18] sm:$0xff]
  %v39 = vld [vmem:[#allocation2 + $0x20] sm:$0xff]
  %v40 = vld [vmem:[#allocation2 + $0x28] sm:$0xff]
  %v41 = vld [vmem:[#allocation2 + $0x30] sm:$0xff]
  %v42 = vld [vmem:[#allocation2 + $0x38] sm:$0xff]
  %v43 = vld [vmem:[#allocation2 + $0x40] sm:$0xff]
  %v44 = vld [vmem:[#allocation2 + $0x48] sm:$0xff]
  %v45 = vld [vmem:[#allocation2 + $0x50] sm:$0xff]
  %v46 = vld [vmem:[#allocation2 + $0x58] sm:$0xff]
  %v47 = vld [vmem:[#allocation2 + $0x60] sm:$0xff]
  %v48 = vld [vmem:[#allocation2 + $0x68] sm:$0xff]
  %v49 = vld [vmem:[#allocation2 + $0x70] sm:$0xff]
  %v50 = vld [vmem:[#allocation2 + $0x78] sm:$0xff]
  %v51 = vld [vmem:[%s0] sm:$0xff]
  %v52 = vld [vmem:[%s0 + $0x8] sm:$0xff]
  %v53 = vld [vmem:[%s0 + $0x10] sm:$0xff]
  %v54 = vld [vmem:[%s0 + $0x18] sm:$0xff]
  %v55 = vld [vmem:[%s0 + $0x20] sm:$0xff]
  %v56 = vld [vmem:[%s0 + $0x28] sm:$0xff]
  %v57 = vld [vmem:[%s0 + $0x30] sm:$0xff]
  %v58 = vld [vmem:[%s0 + $0x38] sm:$0xff]
  %v59 = vld [vmem:[%s0 + $0x40] sm:$0xff]
  %v60 = vld [vmem:[%s0 + $0x48] sm:$0xff]
  %v61 = vld [vmem:[%s0 + $0x50] sm:$0xff]
  %v62 = vld [vmem:[%s0 + $0x58] sm:$0xff]
  %v63 = vld [vmem:[%s0 + $0x60] sm:$0xff]
  %v64 = vld [vmem:[%s0 + $0x68] sm:$0xff]
  %v65 = vld [vmem:[%s0 + $0x70] sm:$0xff]
  %v66 = vld [vmem:[%s0 + $0x78] sm:$0xff]
  %v67 = vld [vmem:[%s1] sm:$0xf]
  %v68 = vld [vmem:[%s1 + $0x4] sm:$0xf]
  %v69 = vld [vmem:[%s1 + $0x8] sm:$0xf]
  %v70 = vld [vmem:[%s1 + $0xc] sm:$0xf]
  %v71 = vld [vmem:[%s1 + $0x10] sm:$0xf]
  %v72 = vld [vmem:[%s1 + $0x14] sm:$0xf]
  %v73 = vld [vmem:[%s1 + $0x18] sm:$0xf]
  %v74 = vld [vmem:[%s1 + $0x1c] sm:$0xf]
  %v75 = vld [vmem:[%s1 + $0x20] sm:$0xf]
  %v76 = vld [vmem:[%s1 + $0x24] sm:$0xf]
  %v77 = vld [vmem:[%s1 + $0x28] sm:$0xf]
  %v78 = vld [vmem:[%s1 + $0x2c] sm:$0xf]
  %v79 = vld [vmem:[%s1 + $0x30] sm:$0xf]
  %v80 = vld [vmem:[%s1 + $0x34] sm:$0xf]
  %v81 = vld [vmem:[%s1 + $0x38] sm:$0xf]
  %v82 = vld [vmem:[%s1 + $0x3c] sm:$0xf]
  %v83 = vld [vmem:[%s1 + $0x40] sm:$0xf]
  %v84 = vld [vmem:[%s1 + $0x44] sm:$0xf]
  %v85 = vld [vmem:[%s1 + $0x48] sm:$0xf]
  %v86 = vld [vmem:[%s1 + $0x4c] sm:$0xf]
  %v87 = vld [vmem:[%s1 + $0x50] sm:$0xf]
  %v88 = vld [vmem:[%s1 + $0x54] sm:$0xf]
  %v89 = vld [vmem:[%s1 + $0x58] sm:$0xf]
  %v90 = vld [vmem:[%s1 + $0x5c] sm:$0xf]
  %v91 = vld [vmem:[%s1 + $0x60] sm:$0xf]
  %v92 = vld [vmem:[%s1 + $0x64] sm:$0xf]
  %v93 = vld [vmem:[%s1 + $0x68] sm:$0xf]
  %v94 = vld [vmem:[%s1 + $0x6c] sm:$0xf]
  %v95 = vld [vmem:[%s1 + $0x70] sm:$0xf]
  %v96 = vld [vmem:[%s1 + $0x74] sm:$0xf]
  %v97 = vld [vmem:[%s1 + $0x78] sm:$0xf]
  %v98 = vld [vmem:[%s1 + $0x7c] sm:$0xf]
  %v115 = vunpack.c.l.b16 %v51
  %v116 = vunpack.c.h.b16 %v51
  %v117 = vunpack.c.l.b16 %v52
  %v118 = vunpack.c.h.b16 %v52
  %v119 = vunpack.c.l.b16 %v53
  %v120 = vunpack.c.h.b16 %v53
  %v121 = vunpack.c.l.b16 %v54
  %v122 = vunpack.c.h.b16 %v54
  %v123 = vunpack.c.l.b16 %v55
  %v124 = vunpack.c.h.b16 %v55
  %v125 = vunpack.c.l.b16 %v56
  %v126 = vunpack.c.h.b16 %v56
  %v127 = vunpack.c.l.b16 %v57
  %v128 = vunpack.c.h.b16 %v57
  %v129 = vunpack.c.l.b16 %v58
  %v130 = vunpack.c.h.b16 %v58
  %v131 = vunpack.c.l.b16 %v59
  %v132 = vunpack.c.h.b16 %v59
  %v133 = vunpack.c.l.b16 %v60
  %v134 = vunpack.c.h.b16 %v60
  %v135 = vunpack.c.l.b16 %v61
  %v136 = vunpack.c.h.b16 %v61
  %v137 = vunpack.c.l.b16 %v62
  %v138 = vunpack.c.h.b16 %v62
  %v139 = vunpack.c.l.b16 %v63
  %v140 = vunpack.c.h.b16 %v63
  %v141 = vunpack.c.l.b16 %v64
  %v142 = vunpack.c.h.b16 %v64
  %v143 = vunpack.c.l.b16 %v65
  %v144 = vunpack.c.h.b16 %v65
  %v145 = vunpack.c.l.b16 %v66
  %v146 = vunpack.c.h.b16 %v66
  %v147 = vpack.c.b16 %v117, %v115
  %v148 = vpack.c.b16 %v118, %v116
  %v149 = vpack.c.b16 %v121, %v119
  %v150 = vpack.c.b16 %v122, %v120
  %v151 = vpack.c.b16 %v125, %v123
  %v152 = vpack.c.b16 %v126, %v124
  %v153 = vpack.c.b16 %v129, %v127
  %v154 = vpack.c.b16 %v130, %v128
  %v155 = vpack.c.b16 %v133, %v131
  %v156 = vpack.c.b16 %v134, %v132
  %v157 = vpack.c.b16 %v137, %v135
  %v158 = vpack.c.b16 %v138, %v136
  %v159 = vpack.c.b16 %v141, %v139
  %v160 = vpack.c.b16 %v142, %v140
  %v161 = vpack.c.b16 %v145, %v143
  %v162 = vpack.c.b16 %v146, %v144
  %v211 = vunpack.c.l.b16 %v67
  %v212 = vunpack.c.l.b16 %v68
  %v213 = vunpack.c.l.b16 %v69
  %v214 = vunpack.c.l.b16 %v70
  %v215 = vunpack.c.l.b16 %v71
  %v216 = vunpack.c.l.b16 %v72
  %v217 = vunpack.c.l.b16 %v73
  %v218 = vunpack.c.l.b16 %v74
  %v219 = vunpack.c.l.b16 %v75
  %v220 = vunpack.c.l.b16 %v76
  %v221 = vunpack.c.l.b16 %v77
  %v222 = vunpack.c.l.b16 %v78
  %v223 = vunpack.c.l.b16 %v79
  %v224 = vunpack.c.l.b16 %v80
  %v225 = vunpack.c.l.b16 %v81
  %v226 = vunpack.c.l.b16 %v82
  %v227 = vunpack.c.l.b16 %v83
  %v228 = vunpack.c.l.b16 %v84
  %v229 = vunpack.c.l.b16 %v85
  %v230 = vunpack.c.l.b16 %v86
  %v231 = vunpack.c.l.b16 %v87
  %v232 = vunpack.c.l.b16 %v88
  %v233 = vunpack.c.l.b16 %v89
  %v234 = vunpack.c.l.b16 %v90
  %v235 = vunpack.c.l.b16 %v91
  %v236 = vunpack.c.l.b16 %v92
  %v237 = vunpack.c.l.b16 %v93
  %v238 = vunpack.c.l.b16 %v94
  %v239 = vunpack.c.l.b16 %v95
  %v240 = vunpack.c.l.b16 %v96
  %v241 = vunpack.c.l.b16 %v97
  %v242 = vunpack.c.l.b16 %v98
  %v243 = vpack.c.b16 %v212, %v211
  %v244 = vpack.c.b16 %v214, %v213
  %v245 = vpack.c.b16 %v216, %v215
  %v246 = vpack.c.b16 %v218, %v217
  %v247 = vpack.c.b16 %v220, %v219
  %v248 = vpack.c.b16 %v222, %v221
  %v249 = vpack.c.b16 %v224, %v223
  %v250 = vpack.c.b16 %v226, %v225
  %v251 = vpack.c.b16 %v228, %v227
  %v252 = vpack.c.b16 %v230, %v229
  %v253 = vpack.c.b16 %v232, %v231
  %v254 = vpack.c.b16 %v234, %v233
  %v255 = vpack.c.b16 %v236, %v235
  %v256 = vpack.c.b16 %v238, %v237
  %v257 = vpack.c.b16 %v240, %v239
  %v258 = vpack.c.b16 %v242, %v241
  %275 = vmatprep.subr.bf16.mxu0 0
  %276 = vmatpush1.bf16.msra.mxu0 %v243
  %277 = vmatprep.subr.bf16.mxu0 0
  %278 = vmatpush1.bf16.msra.mxu0 %v244
  %279 = vmatprep.subr.bf16.mxu0 0
  %280 = vmatpush1.bf16.msra.mxu0 %v245
  %281 = vmatprep.subr.bf16.mxu0 0
  %282 = vmatpush1.bf16.msra.mxu0 %v246
  %283 = vmatprep.subr.bf16.mxu0 0
  %284 = vmatpush1.bf16.msra.mxu0 %v247
  %285 = vmatprep.subr.bf16.mxu0 0
  %286 = vmatpush1.bf16.msra.mxu0 %v248
  %287 = vmatprep.subr.bf16.mxu0 0
  %288 = vmatpush1.bf16.msra.mxu0 %v249
  %289 = vmatprep.subr.bf16.mxu0 0
  %290 = vmatpush1.bf16.msra.mxu0 %v250
  %291 = vmatprep.subr.bf16.mxu0 0
  %292 = vmatpush1.bf16.msra.mxu0 %v251
  %293 = vmatprep.subr.bf16.mxu0 0
  %294 = vmatpush1.bf16.msra.mxu0 %v252
  %295 = vmatprep.subr.bf16.mxu0 0
  %296 = vmatpush1.bf16.msra.mxu0 %v253
  %297 = vmatprep.subr.bf16.mxu0 0
  %298 = vmatpush1.bf16.msra.mxu0 %v254
  %299 = vmatprep.subr.bf16.mxu0 0
  %300 = vmatpush1.bf16.msra.mxu0 %v255
  %301 = vmatprep.subr.bf16.mxu0 0
  %302 = vmatpush1.bf16.msra.mxu0 %v256
  %303 = vmatprep.subr.bf16.mxu0 0
  %304 = vmatpush1.bf16.msra.mxu0 %v257
  %305 = vmatprep.subr.bf16.mxu0 0
  %306 = vmatpush1.bf16.msra.mxu0 %v258
  %307 = vmatprep.mubr.bf16.mxu0 %v148
  %308 = vmatmul.mubr.bf16.gmra.mrb[0].mxu0 %v147
  %v309 = vpop.f32.mrb[0].mxu0
  %v310 = vadd.f32 0.0, %v309
  %v311 = vpop.f32.mrb[0].mxu0
  %v312 = vpop.f32.mrb[0].mxu0
  %v313 = vadd.f32 0.0, %v312
  %v314 = vpop.f32.mrb[0].mxu0
  %315 = vmatprep.mubr.bf16.mxu0 %v150
  %316 = vmatmul.mubr.bf16.gmra.mrb[0].mxu0 %v149
  %v317 = vpop.f32.mrb[0].mxu0
  %v318 = vadd.f32 0.0, %v317
  %v319 = vpop.f32.mrb[0].mxu0
  %v320 = vpop.f32.mrb[0].mxu0
  %v321 = vadd.f32 0.0, %v320
  %v322 = vpop.f32.mrb[0].mxu0
  %323 = vmatprep.mubr.bf16.mxu0 %v152
  %324 = vmatmul.mubr.bf16.gmra.mrb[0].mxu0 %v151
  %v325 = vpop.f32.mrb[0].mxu0
  %v326 = vadd.f32 0.0, %v325
  %v327 = vpop.f32.mrb[0].mxu0
  %v328 = vpop.f32.mrb[0].mxu0
  %v329 = vadd.f32 0.0, %v328
  %v330 = vpop.f32.mrb[0].mxu0
  %331 = vmatprep.mubr.bf16.mxu0 %v154
  %332 = vmatmul.mubr.bf16.gmra.mrb[0].mxu0 %v153
  %v333 = vpop.f32.mrb[0].mxu0
  %v334 = vadd.f32 0.0, %v333
  %v335 = vpop.f32.mrb[0].mxu0
  %v336 = vpop.f32.mrb[0].mxu0
  %v337 = vadd.f32 0.0, %v336
  %v338 = vpop.f32.mrb[0].mxu0
  %339 = vmatprep.mubr.bf16.mxu0 %v156
  %340 = vmatmul.mubr.bf16.gmra.mrb[0].mxu0 %v155
  %v341 = vpop.f32.mrb[0].mxu0
  %v342 = vadd.f32 0.0, %v341
  %v343 = vpop.f32.mrb[0].mxu0
  %v344 = vpop.f32.mrb[0].mxu0
  %v345 = vadd.f32 0.0, %v344
  %v346 = vpop.f32.mrb[0].mxu0
  %347 = vmatprep.mubr.bf16.mxu0 %v158
  %348 = vmatmul.mubr.bf16.gmra.mrb[0].mxu0 %v157
  %v349 = vpop.f32.mrb[0].mxu0
  %v350 = vadd.f32 0.0, %v349
  %v351 = vpop.f32.mrb[0].mxu0
  %v352 = vpop.f32.mrb[0].mxu0
  %v353 = vadd.f32 0.0, %v352
  %v354 = vpop.f32.mrb[0].mxu0
  %355 = vmatprep.mubr.bf16.mxu0 %v160
  %356 = vmatmul.mubr.bf16.gmra.mrb[0].mxu0 %v159
  %v357 = vpop.f32.mrb[0].mxu0
  %v358 = vadd.f32 0.0, %v357
  %v359 = vpop.f32.mrb[0].mxu0
  %v360 = vpop.f32.mrb[0].mxu0
  %v361 = vadd.f32 0.0, %v360
  %v362 = vpop.f32.mrb[0].mxu0
  %363 = vmatprep.mubr.bf16.mxu0 %v162
  %364 = vmatmul.mubr.bf16.gmra.mrb[0].mxu0 %v161
  %v365 = vpop.f32.mrb[0].mxu0
  %v366 = vadd.f32 0.0, %v365
  %v367 = vpop.f32.mrb[0].mxu0
  %v368 = vpop.f32.mrb[0].mxu0
  %v369 = vadd.f32 0.0, %v368
  %v370 = vpop.f32.mrb[0].mxu0
  %371 = vdwg.mxu0
  %v372 = vadd.f32 %v35, %v310
  %v373 = vadd.f32 %v36, %v313
  %v374 = vadd.f32 %v37, %v318
  %v375 = vadd.f32 %v38, %v321
  %v376 = vadd.f32 %v39, %v326
  %v377 = vadd.f32 %v40, %v329
  %v378 = vadd.f32 %v41, %v334
  %v379 = vadd.f32 %v42, %v337
  %v380 = vadd.f32 %v43, %v342
  %v381 = vadd.f32 %v44, %v345
  %v382 = vadd.f32 %v45, %v350
  %v383 = vadd.f32 %v46, %v353
  %v384 = vadd.f32 %v47, %v358
  %v385 = vadd.f32 %v48, %v361
  %v386 = vadd.f32 %v49, %v366
  %v387 = vadd.f32 %v50, %v369
  %388 = vst [vmem:[#allocation2] sm:$0xff] %v372
  %389 = vst [vmem:[#allocation2 + $0x8] sm:$0xff] %v373
  %390 = vst [vmem:[#allocation2 + $0x10] sm:$0xff] %v374
  %391 = vst [vmem:[#allocation2 + $0x18] sm:$0xff] %v375
  %392 = vst [vmem:[#allocation2 + $0x20] sm:$0xff] %v376
  %393 = vst [vmem:[#allocation2 + $0x28] sm:$0xff] %v377
  %394 = vst [vmem:[#allocation2 + $0x30] sm:$0xff] %v378
  %395 = vst [vmem:[#allocation2 + $0x38] sm:$0xff] %v379
  %396 = vst [vmem:[#allocation2 + $0x40] sm:$0xff] %v380
  %397 = vst [vmem:[#allocation2 + $0x48] sm:$0xff] %v381
  %398 = vst [vmem:[#allocation2 + $0x50] sm:$0xff] %v382
  %399 = vst [vmem:[#allocation2 + $0x58] sm:$0xff] %v383
  %400 = vst [vmem:[#allocation2 + $0x60] sm:$0xff] %v384
  %401 = vst [vmem:[#allocation2 + $0x68] sm:$0xff] %v385
  %402 = vst [vmem:[#allocation2 + $0x70] sm:$0xff] %v386
  %403 = vst [vmem:[#allocation2 + $0x78] sm:$0xff] %v387
  // Predicated region
  $region18: #{decoder_block_forward.11} parent=0 // pred_check
    %p404 = pneg %p15
  $region19: #{decoder_block_forward.11} parent=0 // pred_check_branch
    %406 = sbr.rel (%p404) target = $region21
  $region20: #{decoder_block_forward.11} parent=0 // pred_region
    %v407 = vld [vmem:[#allocation2] sm:$0xff]
    %v408 = vld [vmem:[#allocation2 + $0x8] sm:$0xff]
    %v409 = vld [vmem:[#allocation2 + $0x10] sm:$0xff]
    %v410 = vld [vmem:[#allocation2 + $0x18] sm:$0xff]
    %v411 = vld [vmem:[#allocation2 + $0x20] sm:$0xff]
    %v412 = vld [vmem:[#allocation2 + $0x28] sm:$0xff]
    %v413 = vld [vmem:[#allocation2 + $0x30] sm:$0xff]
    %v414 = vld [vmem:[#allocation2 + $0x38] sm:$0xff]
    %v415 = vld [vmem:[#allocation2 + $0x40] sm:$0xff]
    %v416 = vld [vmem:[#allocation2 + $0x48] sm:$0xff]
    %v417 = vld [vmem:[#allocation2 + $0x50] sm:$0xff]
    %v418 = vld [vmem:[#allocation2 + $0x58] sm:$0xff]
    %v419 = vld [vmem:[#allocation2 + $0x60] sm:$0xff]
    %v420 = vld [vmem:[#allocation2 + $0x68] sm:$0xff]
    %v421 = vld [vmem:[#allocation2 + $0x70] sm:$0xff]
    %v422 = vld [vmem:[#allocation2 + $0x78] sm:$0xff]
    %v423 = vld [vmem:[%s2] sm:$0x1]
    %v425 = vlaneseq
    %v426 = vshrl.u32 %v425, 7
    %v427 = vsub.s32 0, %v426
    %v428 = vrot.slane %v423, %v427
    %v430 = vadd.f32 %v407, %v428
    %v431 = vadd.f32 %v408, %v428
    %v432 = vadd.f32 %v409, %v428
    %v433 = vadd.f32 %v410, %v428
    %v434 = vadd.f32 %v411, %v428
    %v435 = vadd.f32 %v412, %v428
    %v436 = vadd.f32 %v413, %v428
    %v437 = vadd.f32 %v414, %v428
    %v438 = vadd.f32 %v415, %v428
    %v439 = vadd.f32 %v416, %v428
    %v440 = vadd.f32 %v417, %v428
    %v441 = vadd.f32 %v418, %v428
    %v442 = vadd.f32 %v419, %v428
    %v443 = vadd.f32 %v420, %v428
    %v444 = vadd.f32 %v421, %v428
    %v445 = vadd.f32 %v422, %v428
    %v446 = vmax.f32 %v430, 0.0
    %v447 = vmax.f32 %v431, 0.0
    %v448 = vmax.f32 %v432, 0.0
    %v449 = vmax.f32 %v433, 0.0
    %v450 = vmax.f32 %v434, 0.0
    %v451 = vmax.f32 %v435, 0.0
    %v452 = vmax.f32 %v436, 0.0
    %v453 = vmax.f32 %v437, 0.0
    %v454 = vmax.f32 %v438, 0.0
    %v455 = vmax.f32 %v439, 0.0
    %v456 = vmax.f32 %v440, 0.0
    %v457 = vmax.f32 %v441, 0.0
    %v458 = vmax.f32 %v442, 0.0
    %v459 = vmax.f32 %v443, 0.0
    %v460 = vmax.f32 %v444, 0.0
    %v461 = vmax.f32 %v445, 0.0
    %v462 = vpack.c.bf16 %v447, %v446
    %v463 = vpack.c.bf16 %v449, %v448
    %v464 = vpack.c.bf16 %v451, %v450
    %v465 = vpack.c.bf16 %v453, %v452
    %v466 = vpack.c.bf16 %v455, %v454
    %v467 = vpack.c.bf16 %v457, %v456
    %v468 = vpack.c.bf16 %v459, %v458
    %v469 = vpack.c.bf16 %v461, %v460
    %v478 = vunpack.c.l.b16 %v462
    %v479 = vunpack.c.h.b16 %v462
    %v480 = vunpack.c.l.b16 %v463
    %v481 = vunpack.c.h.b16 %v463
    %v482 = vunpack.c.l.b16 %v464
    %v483 = vunpack.c.h.b16 %v464
    %v484 = vunpack.c.l.b16 %v465
    %v485 = vunpack.c.h.b16 %v465
    %v486 = vunpack.c.l.b16 %v466
    %v487 = vunpack.c.h.b16 %v466
    %v488 = vunpack.c.l.b16 %v467
    %v489 = vunpack.c.h.b16 %v467
    %v490 = vunpack.c.l.b16 %v468
    %v491 = vunpack.c.h.b16 %v468
    %v492 = vunpack.c.l.b16 %v469
    %v493 = vunpack.c.h.b16 %v469
    %v494 = vpack.c.b16 %v478, %v478
    %v495 = vpack.c.b16 %v479, %v479
    %v496 = vpack.c.b16 %v480, %v480
    %v497 = vpack.c.b16 %v481, %v481
    %v498 = vpack.c.b16 %v482, %v482
    %v499 = vpack.c.b16 %v483, %v483
    %v500 = vpack.c.b16 %v484, %v484
    %v501 = vpack.c.b16 %v485, %v485
    %v502 = vpack.c.b16 %v486, %v486
    %v503 = vpack.c.b16 %v487, %v487
    %v504 = vpack.c.b16 %v488, %v488
    %v505 = vpack.c.b16 %v489, %v489
    %v506 = vpack.c.b16 %v490, %v490
    %v507 = vpack.c.b16 %v491, %v491
    %v508 = vpack.c.b16 %v492, %v492
    %v509 = vpack.c.b16 %v493, %v493
    %526 = vst [vmem:[%s3] sm:$0xf] %v494
    %527 = vst [vmem:[%s3 + $0x4] sm:$0xf] %v495
    %528 = vst [vmem:[%s3 + $0x8] sm:$0xf] %v496
    %529 = vst [vmem:[%s3 + $0xc] sm:$0xf] %v497
    %530 = vst [vmem:[%s3 + $0x10] sm:$0xf] %v498
    %531 = vst [vmem:[%s3 + $0x14] sm:$0xf] %v499
    %532 = vst [vmem:[%s3 + $0x18] sm:$0xf] %v500
    %533 = vst [vmem:[%s3 + $0x1c] sm:$0xf] %v501
    %534 = vst [vmem:[%s3 + $0x20] sm:$0xf] %v502
    %535 = vst [vmem:[%s3 + $0x24] sm:$0xf] %v503
    %536 = vst [vmem:[%s3 + $0x28] sm:$0xf] %v504
    %537 = vst [vmem:[%s3 + $0x2c] sm:$0xf] %v505
    %538 = vst [vmem:[%s3 + $0x30] sm:$0xf] %v506
    %539 = vst [vmem:[%s3 + $0x34] sm:$0xf] %v507
    %540 = vst [vmem:[%s3 + $0x38] sm:$0xf] %v508
    %541 = vst [vmem:[%s3 + $0x3c] sm:$0xf] %v509
  $region21: #{decoder_block_forward.11} parent=0 // pred_fallthru
    _
  // Predicated region
  $region22: #{decoder_block_forward.11} parent=0 // pred_check
    _
  $region23: #{decoder_block_forward.11} parent=0 // pred_check_branch
    %543 = sbr.rel (0) target = $region25
  $region24: #{decoder_block_forward.11} parent=0 // pred_region
    _
  $region25: #{decoder_block_forward.11} parent=0 // pred_fallthru
    _
  // Predicated region
  $region26: #{decoder_block_forward.11} parent=0 // pred_check
    _
  $region27: #{decoder_block_forward.11} parent=0 // pred_check_branch
    %545 = sbr.rel (0) target = $region29
  $region28: #{decoder_block_forward.11} parent=0 // pred_region
    _
  $region29: #{decoder_block_forward.11} parent=0 // pred_fallthru
    _

// kernel: decoder_block_forward.13
$region0: #{decoder_block_forward.13}
  #allocation0 [shape = 'u32[]', space=smem, size = 0x4, offset = 0x4, fixed_abs, tag = 'smem constant byte address 0x4 - core index']
  #allocation1 [shape = 'u32[144,128]{1,0:T(1,128)}', space=vmem, size = 0x12000, scoped, tag = 'internal scratch']
  #allocation2 [shape = 'f32[128,128]{1,0:T(8,128)}', space=vmem, size = 0x10000, scoped, tag = 'scratch operand']
  %s0 = inlined_call_operand.vmem [shape: bf16[512,128], index: 0, kind: input, shape index: {}]
  %s1 = inlined_call_operand.vmem [shape: bf16[128,128], index: 1, kind: input, shape index: {}]
  %s2 = inlined_call_operand.vmem [shape: f32[1,128], index: 2, kind: input, shape index: {}]
  %s3 = inlined_call_operand.vmem [shape: bf16[512,128], index: 3, kind: input, shape index: {}]
  %s4 = inlined_call_operand.hbm [shape: f32[512,128], index: 4, kind: output, shape index: {}]
  %s5 = sld [smem:[#allocation0]]
  $region57: #{decoder_block_forward.13} parent=0
    _
  %s7 = ssub.s32 1, %s5
  %s8 = scalar_select 0, %s7, %s5
  $region1: #{decoder_block_forward.13} parent=0
    #allocation3 [shape = 'u8[131072]{0}', space=vmem, size = 0x20000, scoped, tag = 'output window, operand 0']
    #allocation4 [shape = 's32[2]{0}', space=sflag, size = 0x8, scoped, tag = 'scoped memory for decoder_block_forward.13']
    %9 = vsyncpa [#allocation4], 0
    %s10 = scalar_lea.sflag [#allocation4], 1
    %11 = vsyncpa %s10, 0
    loop: start=0, step=1, limit=6
    $region2: #{decoder_block_forward.13} parent=1 // loop_pre_header
      _
    $region3: #{decoder_block_forward.13} parent=1 // loop_header
      %s13 = sphi 0, %s17
      %p14 = scmp.ge.s32.totalorder %s13, 6
      %s20 = sphi 0, %s39
      %s21 = sphi 0, %s35
      %s22 = sphi 0, %s31
      %s23 = sphi 0, %s20
      %s24 = sphi 0, %s21
      %s25 = sphi 0, %s22
      %s26 = sphi 0, %s23
      %s27 = sphi 0, %s24
      %s28 = sphi 0, %s25
      %s44 = sphi 0, %s46
      %s47 = sphi 0, %s44
      %s48 = sphi 0, %s47
      %s64 = sphi 0, %s48
      %s72 = sphi 0, %s74
      %s75 = sphi 0, %s72
      %s76 = sphi 0, %s75
      %s92 = sphi 0, %s76
      %s98 = sphi 0, %s100
      %s101 = sphi 0, %s98
      %s102 = sphi 0, %s101
      %s118 = sphi 0, %s102
      %s126 = sphi 0, %s128
      %s129 = sphi 0, %s126
      %s130 = sphi 0, %s129
      %s146 = sphi 0, %s130
      %s154 = sphi 0, %s156
      %s157 = sphi 0, %s154
      %s158 = sphi 0, %s157
      %s174 = sphi 0, %s158
    $region4: #{decoder_block_forward.13} parent=1 // loop_header_branch
      %16 = sbr.rel (%p14) target = $region8
    $region5: #{decoder_block_forward.13} parent=1 // loop_body
      %s18 = ssub.s32 %s13, 1
      %s19 = ssub.s32 %s13, 2
      %s29 = sadd.s32 1, %s22
      %p30 = scmp.ge.s32.totalorder %s29, 1
      %s31 = scalar_select %p30, 0, %s29
      %s32 = sadd.s32 1, %s21
      %s33 = scalar_select %p30, %s32, %s21
      %p34 = scmp.ge.s32.totalorder %s33, 1
      %s35 = scalar_select %p34, 0, %s33
      %s36 = sadd.s32 1, %s20
      %s37 = scalar_select %p34, %s36, %s20
      %p38 = scmp.ge.s32.totalorder %s37, 4
      %s39 = scalar_select %p38, 0, %s37
      %s40 = ssub.s32 %s20, %s39
      %s41 = ssub.s32 %s22, %s31
      %s42 = sor.u32 %s40, %s41
      %p43 = scmp.eq.s32.totalorder %s42, 0
      %s45 = sadd.s32 %s44, 1
      %s46 = scalar_select %p43, %s44, %s45
      %p49 = pneg %p43
      %p50 = scmp.eq.s32.totalorder %s13, 3
      %p51 = por %p49, %p50
      %p52 = scmp.ne.s32.totalorder %s44, %s47
      %p53 = scmp.eq.s32.totalorder %s13, 0
      %p54 = por %p52, %p53
      %p55 = scmp.ne.s32.totalorder %s44, %s47
      %p56 = scmp.eq.s32.totalorder %s18, 3
      %p57 = por %p55, %p56
      %p58 = scmp.ne.s32.totalorder %s47, %s48
      %p59 = scmp.eq.s32.totalorder %s18, 0
      %p60 = por %p58, %p59
      %p61 = scmp.ne.s32.totalorder %s47, %s48
      %p62 = scmp.eq.s32.totalorder %s19, 3
      %p63 = por %p61, %p62
      %p65 = scmp.ne.s32.totalorder %s48, %s64
      %p66 = scmp.eq.s32.totalorder %s19, 0
      %p67 = por %p65, %p66
      %s68 = ssub.s32 %s22, %s31
      %s69 = ssub.s32 %s21, %s35
      %s70 = sor.u32 %s68, %s69
      %p71 = scmp.eq.s32.totalorder %s70, 0
      %s73 = sadd.s32 %s72, 1
      %s74 = scalar_select %p71, %s72, %s73
      %p77 = pneg %p71
      %p78 = scmp.eq.s32.totalorder %s13, 3
      %p79 = por %p77, %p78
      %p80 = scmp.ne.s32.totalorder %s72, %s75
      %p81 = scmp.eq.s32.totalorder %s13, 0
      %p82 = por %p80, %p81
      %p83 = scmp.ne.s32.totalorder %s72, %s75
      %p84 = scmp.eq.s32.totalorder %s18, 3
      %p85 = por %p83, %p84
      %p86 = scmp.ne.s32.totalorder %s75, %s76
      %p87 = scmp.eq.s32.totalorder %s18, 0
      %p88 = por %p86, %p87
      %p89 = scmp.ne.s32.totalorder %s75, %s76
      %p90 = scmp.eq.s32.totalorder %s19, 3
      %p91 = por %p89, %p90
      %p93 = scmp.ne.s32.totalorder %s76, %s92
      %p94 = scmp.eq.s32.totalorder %s19, 0
      %p95 = por %p93, %p94
      %s96 = ssub.s32 %s21, %s35
      %p97 = scmp.eq.s32.totalorder %s96, 0
      %s99 = sadd.s32 %s98, 1
      %s100 = scalar_select %p97, %s98, %s99
      %p103 = pneg %p97
      %p104 = scmp.eq.s32.totalorder %s13, 3
      %p105 = por %p103, %p104
      %p106 = scmp.ne.s32.totalorder %s98, %s101
      %p107 = scmp.eq.s32.totalorder %s13, 0
      %p108 = por %p106, %p107
      %p109 = scmp.ne.s32.totalorder %s98, %s101
      %p110 = scmp.eq.s32.totalorder %s18, 3
      %p111 = por %p109, %p110
      %p112 = scmp.ne.s32.totalorder %s101, %s102
      %p113 = scmp.eq.s32.totalorder %s18, 0
      %p114 = por %p112, %p113
      %p115 = scmp.ne.s32.totalorder %s101, %s102
      %p116 = scmp.eq.s32.totalorder %s19, 3
      %p117 = por %p115, %p116
      %p119 = scmp.ne.s32.totalorder %s102, %s118
      %p120 = scmp.eq.s32.totalorder %s19, 0
      %p121 = por %p119, %p120
      %s122 = ssub.s32 %s20, %s39
      %s123 = ssub.s32 %s21, %s35
      %s124 = sor.u32 %s122, %s123
      %p125 = scmp.eq.s32.totalorder %s124, 0
      %s127 = sadd.s32 %s126, 1
      %s128 = scalar_select %p125, %s126, %s127
      %p131 = pneg %p125
      %p132 = scmp.eq.s32.totalorder %s13, 3
      %p133 = por %p131, %p132
      %p134 = scmp.ne.s32.totalorder %s126, %s129
      %p135 = scmp.eq.s32.totalorder %s13, 0
      %p136 = por %p134, %p135
      %p137 = scmp.ne.s32.totalorder %s126, %s129
      %p138 = scmp.eq.s32.totalorder %s18, 3
      %p139 = por %p137, %p138
      %p140 = scmp.ne.s32.totalorder %s129, %s130
      %p141 = scmp.eq.s32.totalorder %s18, 0
      %p142 = por %p140, %p141
      %p143 = scmp.ne.s32.totalorder %s129, %s130
      %p144 = scmp.eq.s32.totalorder %s19, 3
      %p145 = por %p143, %p144
      %p147 = scmp.ne.s32.totalorder %s130, %s146
      %p148 = scmp.eq.s32.totalorder %s19, 0
      %p149 = por %p147, %p148
      %s150 = ssub.s32 %s20, %s39
      %s151 = ssub.s32 %s21, %s35
      %s152 = sor.u32 %s150, %s151
      %p153 = scmp.eq.s32.totalorder %s152, 0
      %s155 = sadd.s32 %s154, 1
      %s156 = scalar_select %p153, %s154, %s155
      %p159 = pneg %p153
      %p160 = scmp.eq.s32.totalorder %s13, 3
      %p161 = por %p159, %p160
      %p162 = scmp.ne.s32.totalorder %s154, %s157
      %p163 = scmp.eq.s32.totalorder %s13, 0
      %p164 = por %p162, %p163
      %p165 = scmp.ne.s32.totalorder %s154, %s157
      %p166 = scmp.eq.s32.totalorder %s18, 3
      %p167 = por %p165, %p166
      %p168 = scmp.ne.s32.totalorder %s157, %s158
      %p169 = scmp.eq.s32.totalorder %s18, 0
      %p170 = por %p168, %p169
      %p171 = scmp.ne.s32.totalorder %s157, %s158
      %p172 = scmp.eq.s32.totalorder %s19, 3
      %p173 = por %p171, %p172
      %p175 = scmp.ne.s32.totalorder %s158, %s174
      %p176 = scmp.eq.s32.totalorder %s19, 0
      %p177 = por %p175, %p176
      %p178 = scmp.le.s32.totalorder 1, %s13
      %p179 = scmp.lt.s32.totalorder %s13, 5
      %p180 = pnand %p178, %p179
      %p181 = pneg %p180
      // Predicated region
      $region9: #{decoder_block_forward.13} parent=5 // pred_check
        _
      $region10: #{decoder_block_forward.13} parent=5 // pred_check_branch
        %183 = sbr.rel (%p180) target = $region12
      $region11: #{decoder_block_forward.13} parent=5 // pred_region
        %s184 = ssub.s32 %s13, 1
        // Predicated region
        $region13: #{decoder_block_forward.13} parent=11 // pred_check
          %p185 = pneg %p88
        $region14: #{decoder_block_forward.13} parent=11 // pred_check_branch
          %187 = sbr.rel (%p185) target = $region16
        $region15: #{decoder_block_forward.13} parent=11 // pred_region
          %s188 = smul.u32 16, %s25
          %p189 = scmp.lt.s32.totalorder %s188, 15
          %s190 = scalar_select %p189, %s188, 15
          %p191 = scmp.lt.s32.totalorder %s24, 0
          %s192 = scalar_select %p191, %s24, 0
          %s193 = sadd.s32 %s192, %s190
          %s194 = smul.addr %s193, 4
          %s195 = scalar_lea.vmem %s1, %s194
          %s196 = smul.u32 16, %s25
        $region16: #{decoder_block_forward.13} parent=11 // pred_fallthru
          _
        // Predicated region
        $region17: #{decoder_block_forward.13} parent=11 // pred_check
          %p197 = pneg %p114
        $region18: #{decoder_block_forward.13} parent=11 // pred_check_branch
          %199 = sbr.rel (%p197) target = $region20
        $region19: #{decoder_block_forward.13} parent=11 // pred_region
          %p200 = scmp.lt.s32.totalorder %s24, 0
          %s201 = scalar_select %p200, %s24, 0
          %s202 = scalar_lea.vmem %s2, %s201
        $region20: #{decoder_block_forward.13} parent=11 // pred_fallthru
          _
      $region12: #{decoder_block_forward.13} parent=5 // pred_fallthru
        _
      %p203 = scmp.lt.s32.totalorder %s13, 4
      // Predicated region
      $region21: #{decoder_block_forward.13} parent=5 // pred_check
        %p204 = pneg %p203
      $region22: #{decoder_block_forward.13} parent=5 // pred_check_branch
        %206 = sbr.rel (%p204) target = $region24
      $region23: #{decoder_block_forward.13} parent=5 // pred_region
        // Predicated region
        $region25: #{decoder_block_forward.13} parent=23 // pred_check
          %p207 = pneg %p54
        $region26: #{decoder_block_forward.13} parent=23 // pred_check_branch
          %209 = sbr.rel (%p207) target = $region28
        $region27: #{decoder_block_forward.13} parent=23 // pred_region
          %s210 = smul.u32 16, %s20
          %p211 = scmp.lt.s32.totalorder %s210, 63
          %s212 = scalar_select %p211, %s210, 63
          %p213 = scmp.lt.s32.totalorder %s22, 0
          %s214 = scalar_select %p213, %s22, 0
          %s215 = sadd.s32 %s214, %s212
          %s216 = smul.addr %s215, 4
          %s217 = scalar_lea.vmem %s0, %s216
          %s218 = smul.u32 16, %s20
        $region28: #{decoder_block_forward.13} parent=23 // pred_fallthru
          _
        // Predicated region
        $region29: #{decoder_block_forward.13} parent=23 // pred_check
          %p219 = pneg %p136
        $region30: #{decoder_block_forward.13} parent=23 // pred_check_branch
          %221 = sbr.rel (%p219) target = $region32
        $region31: #{decoder_block_forward.13} parent=23 // pred_region
          %s222 = smul.u32 16, %s20
          %p223 = scmp.lt.s32.totalorder %s222, 63
          %s224 = scalar_select %p223, %s222, 63
          %p225 = scmp.lt.s32.totalorder %s21, 0
          %s226 = scalar_select %p225, %s21, 0
          %s227 = sadd.s32 %s226, %s224
          %s228 = smul.addr %s227, 4
          %s229 = scalar_lea.vmem %s3, %s228
          %s230 = smul.u32 16, %s20
        $region32: #{decoder_block_forward.13} parent=23 // pred_fallthru
          _
      $region24: #{decoder_block_forward.13} parent=5 // pred_fallthru
        _
      %p231 = scmp.le.s32.totalorder 1, %s13
      %p232 = scmp.lt.s32.totalorder %s13, 5
      %p233 = pnand %p231, %p232
      %p234 = pneg %p233
      // Predicated region
      $region33: #{decoder_block_forward.13} parent=5 // pred_check
        _
      $region34: #{decoder_block_forward.13} parent=5 // pred_check_branch
        %236 = sbr.rel (%p233) target = $region36
      $region35: #{decoder_block_forward.13} parent=5 // pred_region
        %s237 = ssub.s32 %s13, 1
        %s238 = smul.u32 16, %s23
        %p239 = scmp.lt.s32.totalorder %s238, 63
        %s240 = scalar_select %p239, %s238, 63
        %p241 = scmp.lt.s32.totalorder %s25, 0
        %s242 = scalar_select %p241, %s25, 0
        %s243 = sadd.s32 %s242, %s240
        %s244 = smul.addr %s243, 4
        %s245 = scalar_lea.vmem %s0, %s244
        %p246 = pneg %p60
        %p247 = pneg %p57
        %s248 = smul.u32 16, %s25
        %p249 = scmp.lt.s32.totalorder %s248, 15
        %s250 = scalar_select %p249, %s248, 15
        %p251 = scmp.lt.s32.totalorder %s24, 0
        %s252 = scalar_select %p251, %s24, 0
        %s253 = sadd.s32 %s252, %s250
        %s254 = smul.addr %s253, 4
        %s255 = scalar_lea.vmem %s1, %s254
        %p256 = pneg %p88
        %p257 = pneg %p85
        %p258 = scmp.lt.s32.totalorder %s24, 0
        %s259 = scalar_select %p258, %s24, 0
        %s260 = scalar_lea.vmem %s2, %s259
        %p261 = pneg %p114
        %p262 = pneg %p111
        %s263 = smul.u32 16, %s23
        %p264 = scmp.lt.s32.totalorder %s263, 63
        %s265 = scalar_select %p264, %s263, 63
        %p266 = scmp.lt.s32.totalorder %s24, 0
        %s267 = scalar_select %p266, %s24, 0
        %s268 = sadd.s32 %s267, %s265
        %s269 = smul.addr %s268, 4
        %s270 = scalar_lea.vmem %s3, %s269
        %p271 = pneg %p142
        %p272 = pneg %p139
        %p273 = pneg %p170
        %p274 = pneg %p167
        %s275 = sand.u32 %s157, 1
        %s276 = scalar_lea.sflag [#allocation4], %s275
        %s277 = sand.u32 %s157, 1
        %s278 = smul.addr %s277, 128
        %s279 = scalar_lea.vmem [#allocation3], %s278
        %s280 = smul.u32 16, %s23
        %p281 = scmp.lt.s32.totalorder %s280, 63
        %s282 = scalar_select %p281, %s280, 63
        %p283 = scmp.lt.s32.totalorder %s25, 0
        %s284 = scalar_select %p283, %s25, 0
        %s285 = sadd.s32 %s284, %s282
        %s286 = smul.addr %s285, 4
        %s287 = scalar_lea.vmem %s0, %s286
        %s288 = smul.u32 16, %s23
        %s289 = smul.u32 16, %s25
        %p290 = scmp.lt.s32.totalorder %s289, 15
        %s291 = scalar_select %p290, %s289, 15
        %p292 = scmp.lt.s32.totalorder %s24, 0
        %s293 = scalar_select %p292, %s24, 0
        %s294 = sadd.s32 %s293, %s291
        %s295 = smul.addr %s294, 4
        %s296 = scalar_lea.vmem %s1, %s295
        %s297 = smul.u32 16, %s25
        %p298 = scmp.lt.s32.totalorder %s24, 0
        %s299 = scalar_select %p298, %s24, 0
        %s300 = scalar_lea.vmem %s2, %s299
        %s301 = smul.u32 16, %s23
        %p302 = scmp.lt.s32.totalorder %s301, 63
        %s303 = scalar_select %p302, %s301, 63
        %p304 = scmp.lt.s32.totalorder %s24, 0
        %s305 = scalar_select %p304, %s24, 0
        %s306 = sadd.s32 %s305, %s303
        %s307 = smul.addr %s306, 4
        %s308 = scalar_lea.vmem %s3, %s307
        %s309 = smul.u32 16, %s23
        %s310 = smul.u32 16, %s23
        %p312 = scmp.eq.s32.totalorder %s25, 0
        // Predicated region
        $region37: #{decoder_block_forward.13} parent=35 // pred_check
          %p313 = pneg %p312
        $region38: #{decoder_block_forward.13} parent=35 // pred_check_branch
          %315 = sbr.rel (%p313) target = $region40
        $region39: #{decoder_block_forward.13} parent=35 // pred_region
          %316 = vst [vmem:[#allocation2] sm:$0xff] 0.0
          %317 = vst [vmem:[#allocation2 + $0x8] sm:$0xff] 0.0
          %318 = vst [vmem:[#allocation2 + $0x10] sm:$0xff] 0.0
          %319 = vst [vmem:[#allocation2 + $0x18] sm:$0xff] 0.0
          %320 = vst [vmem:[#allocation2 + $0x20] sm:$0xff] 0.0
          %321 = vst [vmem:[#allocation2 + $0x28] sm:$0xff] 0.0
          %322 = vst [vmem:[#allocation2 + $0x30] sm:$0xff] 0.0
          %323 = vst [vmem:[#allocation2 + $0x38] sm:$0xff] 0.0
          %324 = vst [vmem:[#allocation2 + $0x40] sm:$0xff] 0.0
          %325 = vst [vmem:[#allocation2 + $0x48] sm:$0xff] 0.0
          %326 = vst [vmem:[#allocation2 + $0x50] sm:$0xff] 0.0
          %327 = vst [vmem:[#allocation2 + $0x58] sm:$0xff] 0.0
          %328 = vst [vmem:[#allocation2 + $0x60] sm:$0xff] 0.0
          %329 = vst [vmem:[#allocation2 + $0x68] sm:$0xff] 0.0
          %330 = vst [vmem:[#allocation2 + $0x70] sm:$0xff] 0.0
          %331 = vst [vmem:[#allocation2 + $0x78] sm:$0xff] 0.0
        $region40: #{decoder_block_forward.13} parent=35 // pred_fallthru
          _
        %v332 = vld [vmem:[#allocation2] sm:$0xff]
        %v333 = vld [vmem:[#allocation2 + $0x8] sm:$0xff]
        %v334 = vld [vmem:[#allocation2 + $0x10] sm:$0xff]
        %v335 = vld [vmem:[#allocation2 + $0x18] sm:$0xff]
        %v336 = vld [vmem:[#allocation2 + $0x20] sm:$0xff]
        %v337 = vld [vmem:[#allocation2 + $0x28] sm:$0xff]
        %v338 = vld [vmem:[#allocation2 + $0x30] sm:$0xff]
        %v339 = vld [vmem:[#allocation2 + $0x38] sm:$0xff]
        %v340 = vld [vmem:[#allocation2 + $0x40] sm:$0xff]
        %v341 = vld [vmem:[#allocation2 + $0x48] sm:$0xff]
        %v342 = vld [vmem:[#allocation2 + $0x50] sm:$0xff]
        %v343 = vld [vmem:[#allocation2 + $0x58] sm:$0xff]
        %v344 = vld [vmem:[#allocation2 + $0x60] sm:$0xff]
        %v345 = vld [vmem:[#allocation2 + $0x68] sm:$0xff]
        %v346 = vld [vmem:[#allocation2 + $0x70] sm:$0xff]
        %v347 = vld [vmem:[#allocation2 + $0x78] sm:$0xff]
        %v348 = vld [vmem:[%s287] sm:$0xf]
        %v349 = vld [vmem:[%s287 + $0x4] sm:$0xf]
        %v350 = vld [vmem:[%s287 + $0x8] sm:$0xf]
        %v351 = vld [vmem:[%s287 + $0xc] sm:$0xf]
        %v352 = vld [vmem:[%s287 + $0x10] sm:$0xf]
        %v353 = vld [vmem:[%s287 + $0x14] sm:$0xf]
        %v354 = vld [vmem:[%s287 + $0x18] sm:$0xf]
        %v355 = vld [vmem:[%s287 + $0x1c] sm:$0xf]
        %v356 = vld [vmem:[%s287 + $0x20] sm:$0xf]
        %v357 = vld [vmem:[%s287 + $0x24] sm:$0xf]
        %v358 = vld [vmem:[%s287 + $0x28] sm:$0xf]
        %v359 = vld [vmem:[%s287 + $0x2c] sm:$0xf]
        %v360 = vld [vmem:[%s287 + $0x30] sm:$0xf]
        %v361 = vld [vmem:[%s287 + $0x34] sm:$0xf]
        %v362 = vld [vmem:[%s287 + $0x38] sm:$0xf]
        %v363 = vld [vmem:[%s287 + $0x3c] sm:$0xf]
        %v364 = vld [vmem:[%s296] sm:$0xf]
        %v365 = vld [vmem:[%s296 + $0x4] sm:$0xf]
        %v366 = vld [vmem:[%s296 + $0x8] sm:$0xf]
        %v367 = vld [vmem:[%s296 + $0xc] sm:$0xf]
        %v368 = vld [vmem:[%s296 + $0x10] sm:$0xf]
        %v369 = vld [vmem:[%s296 + $0x14] sm:$0xf]
        %v370 = vld [vmem:[%s296 + $0x18] sm:$0xf]
        %v371 = vld [vmem:[%s296 + $0x1c] sm:$0xf]
        %v372 = vld [vmem:[%s296 + $0x20] sm:$0xf]
        %v373 = vld [vmem:[%s296 + $0x24] sm:$0xf]
        %v374 = vld [vmem:[%s296 + $0x28] sm:$0xf]
        %v375 = vld [vmem:[%s296 + $0x2c] sm:$0xf]
        %v376 = vld [vmem:[%s296 + $0x30] sm:$0xf]
        %v377 = vld [vmem:[%s296 + $0x34] sm:$0xf]
        %v378 = vld [vmem:[%s296 + $0x38] sm:$0xf]
        %v379 = vld [vmem:[%s296 + $0x3c] sm:$0xf]
        %v396 = vunpack.c.l.b16 %v348
        %v397 = vunpack.c.l.b16 %v349
        %v398 = vunpack.c.l.b16 %v350
        %v399 = vunpack.c.l.b16 %v351
        %v400 = vunpack.c.l.b16 %v352
        %v401 = vunpack.c.l.b16 %v353
        %v402 = vunpack.c.l.b16 %v354
        %v403 = vunpack.c.l.b16 %v355
        %v404 = vunpack.c.l.b16 %v356
        %v405 = vunpack.c.l.b16 %v357
        %v406 = vunpack.c.l.b16 %v358
        %v407 = vunpack.c.l.b16 %v359
        %v408 = vunpack.c.l.b16 %v360
        %v409 = vunpack.c.l.b16 %v361
        %v410 = vunpack.c.l.b16 %v362
        %v411 = vunpack.c.l.b16 %v363
        %v412 = vpack.c.b16 %v397, %v396
        %v413 = vpack.c.b16 %v399, %v398
        %v414 = vpack.c.b16 %v401, %v400
        %v415 = vpack.c.b16 %v403, %v402
        %v416 = vpack.c.b16 %v405, %v404
        %v417 = vpack.c.b16 %v407, %v406
        %v418 = vpack.c.b16 %v409, %v408
        %v419 = vpack.c.b16 %v411, %v410
        %v444 = vunpack.c.l.b16 %v364
        %v445 = vunpack.c.l.b16 %v365
        %v446 = vunpack.c.l.b16 %v366
        %v447 = vunpack.c.l.b16 %v367
        %v448 = vunpack.c.l.b16 %v368
        %v449 = vunpack.c.l.b16 %v369
        %v450 = vunpack.c.l.b16 %v370
        %v451 = vunpack.c.l.b16 %v371
        %v452 = vunpack.c.l.b16 %v372
        %v453 = vunpack.c.l.b16 %v373
        %v454 = vunpack.c.l.b16 %v374
        %v455 = vunpack.c.l.b16 %v375
        %v456 = vunpack.c.l.b16 %v376
        %v457 = vunpack.c.l.b16 %v377
        %v458 = vunpack.c.l.b16 %v378
        %v459 = vunpack.c.l.b16 %v379
        %v460 = vpack.c.b16 %v445, %v444
        %v461 = vpack.c.b16 %v447, %v446
        %v462 = vpack.c.b16 %v449, %v448
        %v463 = vpack.c.b16 %v451, %v450
        %v464 = vpack.c.b16 %v453, %v452
        %v465 = vpack.c.b16 %v455, %v454
        %v466 = vpack.c.b16 %v457, %v456
        %v467 = vpack.c.b16 %v459, %v458
        %476 = vmatprep.subr.bf16.mxu0 0
        %477 = vmatpush1.bf16.msra.mxu0 %v460
        %478 = vmatprep.subr.bf16.mxu0 0
        %479 = vmatpush1.bf16.msra.mxu0 %v461
        %480 = vmatprep.subr.bf16.mxu0 0
        %481 = vmatpush1.bf16.msra.mxu0 %v462
        %482 = vmatprep.subr.bf16.mxu0 0
        %483 = vmatpush1.bf16.msra.mxu0 %v463
        %484 = vmatprep.subr.bf16.mxu0 0
        %485 = vmatpush1.bf16.msra.mxu0 %v464
        %486 = vmatprep.subr.bf16.mxu0 0
        %487 = vmatpush1.bf16.msra.mxu0 %v465
        %488 = vmatprep.subr.bf16.mxu0 0
        %489 = vmatpush1.bf16.msra.mxu0 %v466
        %490 = vmatprep.subr.bf16.mxu0 0
        %491 = vmatpush1.bf16.msra.mxu0 %v467
        %492 = vmatprep.subr.bf16.mxu0 0
        %493 = vmatpush1.bf16.msra.mxu0 0
        %494 = vmatprep.subr.bf16.mxu0 0
        %495 = vmatpush1.bf16.msra.mxu0 0
        %496 = vmatprep.subr.bf16.mxu0 0
        %497 = vmatpush1.bf16.msra.mxu0 0
        %498 = vmatprep.subr.bf16.mxu0 0
        %499 = vmatpush1.bf16.msra.mxu0 0
        %500 = vmatprep.subr.bf16.mxu0 0
        %501 = vmatpush1.bf16.msra.mxu0 0
        %502 = vmatprep.subr.bf16.mxu0 0
        %503 = vmatpush1.bf16.msra.mxu0 0
        %504 = vmatprep.subr.bf16.mxu0 0
        %505 = vmatpush1.bf16.msra.mxu0 0
        %506 = vmatprep.subr.bf16.mxu0 0
        %507 = vmatpush1.bf16.msra.mxu0 0
        %508 = vmatprep.mubr.bf16.mxu0 0
        %509 = vmatmul.mubr.bf16.gmra.mrb[0].mxu0 %v412
        %v510 = vpop.f32.mrb[0].mxu0
        %v511 = vadd.f32 0.0, %v510
        %v512 = vpop.f32.mrb[0].mxu0
        %v513 = vpop.f32.mrb[0].mxu0
        %v514 = vadd.f32 0.0, %v513
        %v515 = vpop.f32.mrb[0].mxu0
        %516 = vmatprep.mubr.bf16.mxu0 0
        %517 = vmatmul.mubr.bf16.gmra.mrb[0].mxu0 %v413
        %v518 = vpop.f32.mrb[0].mxu0
        %v519 = vadd.f32 0.0, %v518
        %v520 = vpop.f32.mrb[0].mxu0
        %v521 = vpop.f32.mrb[0].mxu0
        %v522 = vadd.f32 0.0, %v521
        %v523 = vpop.f32.mrb[0].mxu0
        %524 = vmatprep.mubr.bf16.mxu0 0
        %525 = vmatmul.mubr.bf16.gmra.mrb[0].mxu0 %v414
        %v526 = vpop.f32.mrb[0].mxu0
        %v527 = vadd.f32 0.0, %v526
        %v528 = vpop.f32.mrb[0].mxu0
        %v529 = vpop.f32.mrb[0].mxu0
        %v530 = vadd.f32 0.0, %v529
        %v531 = vpop.f32.mrb[0].mxu0
        %532 = vmatprep.mubr.bf16.mxu0 0
        %533 = vmatmul.mubr.bf16.gmra.mrb[0].mxu0 %v415
        %v534 = vpop.f32.mrb[0].mxu0
        %v535 = vadd.f32 0.0, %v534
        %v536 = vpop.f32.mrb[0].mxu0
        %v537 = vpop.f32.mrb[0].mxu0
        %v538 = vadd.f32 0.0, %v537
        %v539 = vpop.f32.mrb[0].mxu0
        %540 = vmatprep.mubr.bf16.mxu0 0
        %541 = vmatmul.mubr.bf16.gmra.mrb[0].mxu0 %v416
        %v542 = vpop.f32.mrb[0].mxu0
        %v543 = vadd.f32 0.0, %v542
        %v544 = vpop.f32.mrb[0].mxu0
        %v545 = vpop.f32.mrb[0].mxu0
        %v546 = vadd.f32 0.0, %v545
        %v547 = vpop.f32.mrb[0].mxu0
        %548 = vmatprep.mubr.bf16.mxu0 0
        %549 = vmatmul.mubr.bf16.gmra.mrb[0].mxu0 %v417
        %v550 = vpop.f32.mrb[0].mxu0
        %v551 = vadd.f32 0.0, %v550
        %v552 = vpop.f32.mrb[0].mxu0
        %v553 = vpop.f32.mrb[0].mxu0
        %v554 = vadd.f32 0.0, %v553
        %v555 = vpop.f32.mrb[0].mxu0
        %556 = vmatprep.mubr.bf16.mxu0 0
        %557 = vmatmul.mubr.bf16.gmra.mrb[0].mxu0 %v418
        %v558 = vpop.f32.mrb[0].mxu0
        %v559 = vadd.f32 0.0, %v558
        %v560 = vpop.f32.mrb[0].mxu0
        %v561 = vpop.f32.mrb[0].mxu0
        %v562 = vadd.f32 0.0, %v561
        %v563 = vpop.f32.mrb[0].mxu0
        %564 = vmatprep.mubr.bf16.mxu0 0
        %565 = vmatmul.mubr.bf16.gmra.mrb[0].mxu0 %v419
        %v566 = vpop.f32.mrb[0].mxu0
        %v567 = vadd.f32 0.0, %v566
        %v568 = vpop.f32.mrb[0].mxu0
        %v569 = vpop.f32.mrb[0].mxu0
        %v570 = vadd.f32 0.0, %v569
        %v571 = vpop.f32.mrb[0].mxu0
        %572 = vdwg.mxu0
        %v573 = vadd.f32 %v332, %v511
        %v574 = vadd.f32 %v333, %v514
        %v575 = vadd.f32 %v334, %v519
        %v576 = vadd.f32 %v335, %v522
        %v577 = vadd.f32 %v336, %v527
        %v578 = vadd.f32 %v337, %v530
        %v579 = vadd.f32 %v338, %v535
        %v580 = vadd.f32 %v339, %v538
        %v581 = vadd.f32 %v340, %v543
        %v582 = vadd.f32 %v341, %v546
        %v583 = vadd.f32 %v342, %v551
        %v584 = vadd.f32 %v343, %v554
        %v585 = vadd.f32 %v344, %v559
        %v586 = vadd.f32 %v345, %v562
        %v587 = vadd.f32 %v346, %v567
        %v588 = vadd.f32 %v347, %v570
        %589 = vst [vmem:[#allocation2] sm:$0xff] %v573
        %590 = vst [vmem:[#allocation2 + $0x8] sm:$0xff] %v574
        %591 = vst [vmem:[#allocation2 + $0x10] sm:$0xff] %v575
        %592 = vst [vmem:[#allocation2 + $0x18] sm:$0xff] %v576
        %593 = vst [vmem:[#allocation2 + $0x20] sm:$0xff] %v577
        %594 = vst [vmem:[#allocation2 + $0x28] sm:$0xff] %v578
        %595 = vst [vmem:[#allocation2 + $0x30] sm:$0xff] %v579
        %596 = vst [vmem:[#allocation2 + $0x38] sm:$0xff] %v580
        %597 = vst [vmem:[#allocation2 + $0x40] sm:$0xff] %v581
        %598 = vst [vmem:[#allocation2 + $0x48] sm:$0xff] %v582
        %599 = vst [vmem:[#allocation2 + $0x50] sm:$0xff] %v583
        %600 = vst [vmem:[#allocation2 + $0x58] sm:$0xff] %v584
        %601 = vst [vmem:[#allocation2 + $0x60] sm:$0xff] %v585
        %602 = vst [vmem:[#allocation2 + $0x68] sm:$0xff] %v586
        %603 = vst [vmem:[#allocation2 + $0x70] sm:$0xff] %v587
        %604 = vst [vmem:[#allocation2 + $0x78] sm:$0xff] %v588
        // Predicated region
        $region41: #{decoder_block_forward.13} parent=35 // pred_check
          %p605 = pneg %p312
        $region42: #{decoder_block_forward.13} parent=35 // pred_check_branch
          %607 = sbr.rel (%p605) target = $region44
        $region43: #{decoder_block_forward.13} parent=35 // pred_region
          %v608 = vld [vmem:[#allocation2] sm:$0xff]
          %v609 = vld [vmem:[#allocation2 + $0x8] sm:$0xff]
          %v610 = vld [vmem:[#allocation2 + $0x10] sm:$0xff]
          %v611 = vld [vmem:[#allocation2 + $0x18] sm:$0xff]
          %v612 = vld [vmem:[#allocation2 + $0x20] sm:$0xff]
          %v613 = vld [vmem:[#allocation2 + $0x28] sm:$0xff]
          %v614 = vld [vmem:[#allocation2 + $0x30] sm:$0xff]
          %v615 = vld [vmem:[#allocation2 + $0x38] sm:$0xff]
          %v616 = vld [vmem:[#allocation2 + $0x40] sm:$0xff]
          %v617 = vld [vmem:[#allocation2 + $0x48] sm:$0xff]
          %v618 = vld [vmem:[#allocation2 + $0x50] sm:$0xff]
          %v619 = vld [vmem:[#allocation2 + $0x58] sm:$0xff]
          %v620 = vld [vmem:[#allocation2 + $0x60] sm:$0xff]
          %v621 = vld [vmem:[#allocation2 + $0x68] sm:$0xff]
          %v622 = vld [vmem:[#allocation2 + $0x70] sm:$0xff]
          %v623 = vld [vmem:[#allocation2 + $0x78] sm:$0xff]
          %v624 = vld [vmem:[%s300] sm:$0x1]
          %v626 = vlaneseq
          %v627 = vshrl.u32 %v626, 7
          %v628 = vsub.s32 0, %v627
          %v629 = vrot.slane %v624, %v628
          %v631 = vadd.f32 %v608, %v629
          %v632 = vadd.f32 %v609, %v629
          %v633 = vadd.f32 %v610, %v629
          %v634 = vadd.f32 %v611, %v629
          %v635 = vadd.f32 %v612, %v629
          %v636 = vadd.f32 %v613, %v629
          %v637 = vadd.f32 %v614, %v629
          %v638 = vadd.f32 %v615, %v629
          %v639 = vadd.f32 %v616, %v629
          %v640 = vadd.f32 %v617, %v629
          %v641 = vadd.f32 %v618, %v629
          %v642 = vadd.f32 %v619, %v629
          %v643 = vadd.f32 %v620, %v629
          %v644 = vadd.f32 %v621, %v629
          %v645 = vadd.f32 %v622, %v629
          %v646 = vadd.f32 %v623, %v629
          %v647 = vld [vmem:[%s308] sm:$0xf]
          %v648 = vld [vmem:[%s308 + $0x4] sm:$0xf]
          %v649 = vld [vmem:[%s308 + $0x8] sm:$0xf]
          %v650 = vld [vmem:[%s308 + $0xc] sm:$0xf]
          %v651 = vld [vmem:[%s308 + $0x10] sm:$0xf]
          %v652 = vld [vmem:[%s308 + $0x14] sm:$0xf]
          %v653 = vld [vmem:[%s308 + $0x18] sm:$0xf]
          %v654 = vld [vmem:[%s308 + $0x1c] sm:$0xf]
          %v655 = vld [vmem:[%s308 + $0x20] sm:$0xf]
          %v656 = vld [vmem:[%s308 + $0x24] sm:$0xf]
          %v657 = vld [vmem:[%s308 + $0x28] sm:$0xf]
          %v658 = vld [vmem:[%s308 + $0x2c] sm:$0xf]
          %v659 = vld [vmem:[%s308 + $0x30] sm:$0xf]
          %v660 = vld [vmem:[%s308 + $0x34] sm:$0xf]
          %v661 = vld [vmem:[%s308 + $0x38] sm:$0xf]
          %v662 = vld [vmem:[%s308 + $0x3c] sm:$0xf]
          %v663 = vunpack.c.l.bf16 %v647
          %v664 = vunpack.c.l.bf16 %v648
          %v665 = vunpack.c.l.bf16 %v649
          %v666 = vunpack.c.l.bf16 %v650
          %v667 = vunpack.c.l.bf16 %v651
          %v668 = vunpack.c.l.bf16 %v652
          %v669 = vunpack.c.l.bf16 %v653
          %v670 = vunpack.c.l.bf16 %v654
          %v671 = vunpack.c.l.bf16 %v655
          %v672 = vunpack.c.l.bf16 %v656
          %v673 = vunpack.c.l.bf16 %v657
          %v674 = vunpack.c.l.bf16 %v658
          %v675 = vunpack.c.l.bf16 %v659
          %v676 = vunpack.c.l.bf16 %v660
          %v677 = vunpack.c.l.bf16 %v661
          %v678 = vunpack.c.l.bf16 %v662
          %v679 = vadd.f32 %v631, %v663
          %v680 = vadd.f32 %v632, %v664
          %v681 = vadd.f32 %v633, %v665
          %v682 = vadd.f32 %v634, %v666
          %v683 = vadd.f32 %v635, %v667
          %v684 = vadd.f32 %v636, %v668
          %v685 = vadd.f32 %v637, %v669
          %v686 = vadd.f32 %v638, %v670
          %v687 = vadd.f32 %v639, %v671
          %v688 = vadd.f32 %v640, %v672
          %v689 = vadd.f32 %v641, %v673
          %v690 = vadd.f32 %v642, %v674
          %v691 = vadd.f32 %v643, %v675
          %v692 = vadd.f32 %v644, %v676
          %v693 = vadd.f32 %v645, %v677
          %v694 = vadd.f32 %v646, %v678
          %v695 = vmax.f32 %v679, 0.0
          %v696 = vmax.f32 %v680, 0.0
          %v697 = vmax.f32 %v681, 0.0
          %v698 = vmax.f32 %v682, 0.0
          %v699 = vmax.f32 %v683, 0.0
          %v700 = vmax.f32 %v684, 0.0
          %v701 = vmax.f32 %v685, 0.0
          %v702 = vmax.f32 %v686, 0.0
          %v703 = vmax.f32 %v687, 0.0
          %v704 = vmax.f32 %v688, 0.0
          %v705 = vmax.f32 %v689, 0.0
          %v706 = vmax.f32 %v690, 0.0
          %v707 = vmax.f32 %v691, 0.0
          %v708 = vmax.f32 %v692, 0.0
          %v709 = vmax.f32 %v693, 0.0
          %v710 = vmax.f32 %v694, 0.0
          %711 = vst [vmem:[%s279] sm:$0xff] %v695
          %712 = vst [vmem:[%s279 + $0x8] sm:$0xff] %v696
          %713 = vst [vmem:[%s279 + $0x10] sm:$0xff] %v697
          %714 = vst [vmem:[%s279 + $0x18] sm:$0xff] %v698
          %715 = vst [vmem:[%s279 + $0x20] sm:$0xff] %v699
          %716 = vst [vmem:[%s279 + $0x28] sm:$0xff] %v700
          %717 = vst [vmem:[%s279 + $0x30] sm:$0xff] %v701
          %718 = vst [vmem:[%s279 + $0x38] sm:$0xff] %v702
          %719 = vst [vmem:[%s279 + $0x40] sm:$0xff] %v703
          %720 = vst [vmem:[%s279 + $0x48] sm:$0xff] %v704
          %721 = vst [vmem:[%s279 + $0x50] sm:$0xff] %v705
          %722 = vst [vmem:[%s279 + $0x58] sm:$0xff] %v706
          %723 = vst [vmem:[%s279 + $0x60] sm:$0xff] %v707
          %724 = vst [vmem:[%s279 + $0x68] sm:$0xff] %v708
          %725 = vst [vmem:[%s279 + $0x70] sm:$0xff] %v709
          %726 = vst [vmem:[%s279 + $0x78] sm:$0xff] %v710
        $region44: #{decoder_block_forward.13} parent=35 // pred_fallthru
          _
        %s727 = sand.u32 %s157, 1
        %s728 = scalar_lea.sflag [#allocation4], %s727
        %s729 = sand.u32 %s157, 1
        %s730 = smul.addr %s729, 128
        %s731 = scalar_lea.vmem [#allocation3], %s730
        // Predicated region
        $region45: #{decoder_block_forward.13} parent=35 // pred_check
          %p732 = pneg %p167
        $region46: #{decoder_block_forward.13} parent=35 // pred_check_branch
          %734 = sbr.rel (%p732) target = $region48
        $region47: #{decoder_block_forward.13} parent=35 // pred_region
          %s735 = smul.u32 16, %s23
          %s737 = ssub.s32 2048, 2048
          %738 = vsyncadd %s728, %s737
          %s739 = sadd.s32 %s24, %s735
          %s740 = smul.addr %s739, 128
          %s741 = scalar_lea.hbm %s4, %s740
          %s742 = sshll.u32 %s731, 4
          %s743 = int_to_ptr.vmem [resolvable:$true] %s742
          %748 = dma.vmem_to_hbm [thread:$0]  %s743, 2048, %s741, %s728, 128, 128, 8
        $region48: #{decoder_block_forward.13} parent=35 // pred_fallthru
          _
      $region36: #{decoder_block_forward.13} parent=5 // pred_fallthru
        _
      %p749 = scmp.le.s32.totalorder 2, %s13
      // Predicated region
      $region49: #{decoder_block_forward.13} parent=5 // pred_check
        %p750 = pneg %p749
      $region50: #{decoder_block_forward.13} parent=5 // pred_check_branch
        %752 = sbr.rel (%p750) target = $region52
      $region51: #{decoder_block_forward.13} parent=5 // pred_region
        %s753 = ssub.s32 %s13, 2
        // Predicated region
        $region53: #{decoder_block_forward.13} parent=51 // pred_check
          %p754 = pneg %p173
        $region54: #{decoder_block_forward.13} parent=51 // pred_check_branch
          %756 = sbr.rel (%p754) target = $region56
        $region55: #{decoder_block_forward.13} parent=51 // pred_region
          %s757 = sand.u32 %s158, 1
          %s758 = scalar_lea.sflag [#allocation4], %s757
          %s759 = sand.u32 %s158, 1
          %s760 = smul.addr %s759, 128
          %s761 = scalar_lea.vmem [#allocation3], %s760
          %762 = dma.done %s758, 2048
        $region56: #{decoder_block_forward.13} parent=51 // pred_fallthru
          _
      $region52: #{decoder_block_forward.13} parent=5 // pred_fallthru
        _
    $region6: #{decoder_block_forward.13} parent=1 // loop_footer
      %s17 = sadd.s32 1, %s13
    $region7: #{decoder_block_forward.13} parent=1 // loop_footer_branch
      %12 = sbr.rel target = $region3
    $region8: #{decoder_block_forward.13} parent=1 // loop_exit
      _
    %763 = vsyncpa [#allocation4], 1
    %s764 = scalar_lea.sflag [#allocation4], 1
    %765 = vsyncpa %s764, 1

</llo_original>
